<compile_context>
chip_gen: v7x
topology: tpu7x:2x2x1
jax: 0.10.0
libtpu: 0.0.40
codegen_flags: <defaults>
</compile_context>

<pallas_src>
import functools
import math

import jax
import jax.numpy as jnp
from jax.experimental import pallas as pl
from jax.experimental.pallas import tpu as pltpu

# ----------------------------- config ---------------------------------------
VOCAB = 64
MAX_POS = 16
HIDDEN = 32
N_HEADS = 2
HEAD_DIM = HIDDEN // N_HEADS
INTERMEDIATE = 64
N_LAYERS = 2
N_CLASSES = 2
LN_EPS = 1e-12


def _vmem_specs(n):
    return [pl.BlockSpec(memory_space=pltpu.MemorySpace.VMEM) for _ in range(n)]


# --------------------------- kernel helpers ----------------------------------
def _layernorm(x, g, b):
    mu = jnp.mean(x, axis=-1, keepdims=True)
    var = jnp.mean((x - mu) ** 2, axis=-1, keepdims=True)
    return (x - mu) * jax.lax.rsqrt(var + LN_EPS) * g + b


def _gelu(x):
    # TODO(synk): BERT uses exact erf GELU; tanh approximation used for robust Mosaic lowering.
    c = math.sqrt(2.0 / math.pi)
    return 0.5 * x * (1.0 + jnp.tanh(c * (x + 0.044715 * x * x * x)))


def _softmax(x):
    m = jnp.max(x, axis=-1, keepdims=True)
    e = jnp.exp(x - m)
    return e * pl.reciprocal(jnp.sum(e, axis=-1, keepdims=True), approx=True)


# ------------------------------ fused kernel ----------------------------------
def fused_forward_kernel(B, S, ids_ref, mask_ref, emb_ref, wqkv_ref, wo_ref,
                         w1_ref, w2_ref, lvec_ref, head_ref, o_ref):
    BS = B * S
    scale = 1.0 / math.sqrt(HEAD_DIM)

    ids = ids_ref[...]                      # (BS, 3) int32: [word_id, VOCAB+pos, batch_id]
    mk = mask_ref[...]                      # (2, BS) int32: [attn_mask(0/1), batch_id]

    # ---- embeddings via one-hot matmul (word + position + token-type folded into the table)
    etab = emb_ref[...]                     # (VOCAB+MAX_POS+2, H)
    col = jax.lax.broadcasted_iota(jnp.int32, (BS, VOCAB + MAX_POS), 1)
    onehot = ((col == ids[:, 0:1]) | (col == ids[:, 1:2])).astype(jnp.float32)
    emb = jnp.dot(onehot, etab[0:VOCAB + MAX_POS, :],
                  preferred_element_type=jnp.float32)                       # (BS, H)
    x = _layernorm(emb, etab[VOCAB + MAX_POS, :], etab[VOCAB + MAX_POS + 1, :])

    # ---- additive attention mask built once (padding + cross-batch block-diagonal), hoisted
    allowed = (ids[:, 2:3] == mk[1:2, :]) & (mk[0:1, :] > 0)                # (BS, BS)
    add_mask = jnp.where(allowed, 0.0, -1.0e9).astype(jnp.float32)
    mask_h = jnp.broadcast_to(add_mask[None, :, :], (N_HEADS, BS, BS))

    for l in range(N_LAYERS):                                               # tiny, unrolled
        lv = lvec_ref[l]                                                    # (8, 3H) biases/LN
        # Fused QKV projection over all rows of all batches at once.
        qkv = jnp.dot(x, wqkv_ref[l],
                      preferred_element_type=jnp.float32) + lv[0]           # (BS, 3H)

        # Stack heads into a leading batch dim; contiguous 16-lane slices only.
        q = jnp.stack([qkv[:, 0 * HIDDEN + h * HEAD_DIM: 0 * HIDDEN + (h + 1) * HEAD_DIM]
                       for h in range(N_HEADS)], axis=0)                    # (NH, BS, HD)
        k = jnp.stack([qkv[:, 1 * HIDDEN + h * HEAD_DIM: 1 * HIDDEN + (h + 1) * HEAD_DIM]
                       for h in range(N_HEADS)], axis=0)
        v = jnp.stack([qkv[:, 2 * HIDDEN + h * HEAD_DIM: 2 * HIDDEN + (h + 1) * HEAD_DIM]
                       for h in range(N_HEADS)], axis=0)

        # Batched scores / softmax / context over all (batch, head) at once; cross-batch
        # positions are killed by the block-diagonal additive mask.
        scores = jnp.einsum('hqd,hkd->hqk', q, k,
                            preferred_element_type=jnp.float32) * scale     # (NH, BS, BS)
        p = _softmax(scores + mask_h)
        ctx = jnp.einsum('hqk,hkd->hqd', p, v,
                         preferred_element_type=jnp.float32)                # (NH, BS, HD)
        ctx = jnp.concatenate([ctx[h] for h in range(N_HEADS)], axis=-1)    # (BS, H)

        # Output projection + residual/LN + FFN over all rows.
        attn = jnp.dot(ctx, wo_ref[l],
                       preferred_element_type=jnp.float32) + lv[1, :HIDDEN]
        h1 = _layernorm(x + attn, lv[4, :HIDDEN], lv[5, :HIDDEN])
        ffn = _gelu(jnp.dot(h1, w1_ref[l],
                            preferred_element_type=jnp.float32) + lv[2, :INTERMEDIATE])
        ffn = jnp.dot(ffn, w2_ref[l],
                      preferred_element_type=jnp.float32) + lv[3, :HIDDEN]
        x = _layernorm(h1 + ffn, lv[6, :HIDDEN], lv[7, :HIDDEN])

    # ---- BertPooler: tanh(Linear(h[:, 0])) then classifier, lane-dense padded store.
    cls = x.reshape(B, S, HIDDEN)[:, 0, :]                                  # (B, H)
    hp = head_ref[0]                                                        # (H+8, 128)
    pooled = jnp.tanh(jnp.dot(cls, hp[0:HIDDEN, 0:HIDDEN],
                              preferred_element_type=jnp.float32) + hp[HIDDEN, 0:HIDDEN])
    # nn.Dropout is defined in __init__ but not applied in forward() -> no-op.
    hc = head_ref[1]                                                        # (H+8, 128)
    o_ref[...] = (jnp.dot(pooled, hc[0:HIDDEN, :],
                          preferred_element_type=jnp.float32) + hc[HIDDEN, :])   # (B, 128)


# --------------------------- parameter init -----------------------------------
def init_params(key):
    # TODO(synk): from_pretrained() checkpoint load replaced by deterministic random init.
    def dense(k, shape):
        return jax.random.normal(k, shape, jnp.float32) * 0.02

    keys = jax.random.split(key, 5 + 6 * N_LAYERS)
    ki = iter(keys)

    word = dense(next(ki), (VOCAB, HIDDEN))
    pos = dense(next(ki), (MAX_POS, HIDDEN))
    typ = dense(next(ki), (2, HIDDEN))
    # Packed embedding table: [word | pos + type_emb[0] | emb-LN gamma | emb-LN beta]
    emb_tab = jnp.concatenate([
        word,
        pos + typ[0][None, :],
        jnp.ones((1, HIDDEN), jnp.float32),
        jnp.zeros((1, HIDDEN), jnp.float32),
    ], axis=0)                                                   # (V+MAX_POS+2, H)

    pooler_w = dense(next(ki), (HIDDEN, HIDDEN))
    out_w = dense(next(ki), (HIDDEN, N_CLASSES))
    # Padded head slab: [0] pooler weight+bias, [1] classifier weight+bias (lane-dense 128).
    head = jnp.zeros((2, HIDDEN + 8, 128), jnp.float32)
    head = head.at[0, :HIDDEN, :HIDDEN].set(pooler_w)
    head = head.at[1, :HIDDEN, :N_CLASSES].set(out_w)
    # pooler_b / out_b are zero-init -> already zero in the slab.

    wqkv, wo, w1, w2 = [], [], [], []
    for _ in range(N_LAYERS):
        wq = dense(next(ki), (HIDDEN, HIDDEN))
        wk = dense(next(ki), (HIDDEN, HIDDEN))
        wv = dense(next(ki), (HIDDEN, HIDDEN))
        wqkv.append(jnp.concatenate([wq, wk, wv], axis=1))       # (H, 3H)
        wo.append(dense(next(ki), (HIDDEN, HIDDEN)))
        w1.append(dense(next(ki), (HIDDEN, INTERMEDIATE)))
        w2.append(dense(next(ki), (INTERMEDIATE, HIDDEN)))

    # Packed per-layer biases + LayerNorm params, one row per vector (padded to 3H lanes):
    # row 0: bqkv, 1: bo, 2: b1, 3: b2, 4: ln1_g, 5: ln1_b, 6: ln2_g, 7: ln2_b
    lvec = jnp.zeros((N_LAYERS, 8, 3 * HIDDEN), jnp.float32)
    lvec = lvec.at[:, 4, :HIDDEN].set(1.0)
    lvec = lvec.at[:, 6, :HIDDEN].set(1.0)

    return {"emb_tab": emb_tab, "head": head,
            "wqkv": jnp.stack(wqkv), "wo": jnp.stack(wo),
            "w1": jnp.stack(w1), "w2": jnp.stack(w2), "lvec": lvec}


# ------------------------------ forward ----------------------------------------
@jax.jit
def spam_classifier_forward(params, input_ids, attention_mask):
    B, S = input_ids.shape
    assert S <= MAX_POS
    BS = B * S

    # Pack raw int ids / mask with position & batch tags (free inside jit; all heavy work
    # and the additive-mask / embedding math happen inside the kernel).
    pos_ids = jnp.tile(jnp.arange(S, dtype=jnp.int32), B)                   # (BS,)
    batch_ids = jnp.repeat(jnp.arange(B, dtype=jnp.int32), S)               # (BS,)
    ids_pack = jnp.stack([input_ids.reshape(BS).astype(jnp.int32),
                          VOCAB + pos_ids, batch_ids], axis=1)              # (BS, 3)
    mask_pack = jnp.stack([attention_mask.reshape(BS).astype(jnp.int32),
                           batch_ids], axis=0)                              # (2, BS)

    kern = functools.partial(fused_forward_kernel, B, S)
    out = pl.pallas_call(
        kern,
        out_shape=jax.ShapeDtypeStruct((B, 128), jnp.float32),              # lane-dense store
        in_specs=_vmem_specs(9),
        out_specs=pl.BlockSpec(memory_space=pltpu.MemorySpace.VMEM),
    )(ids_pack, mask_pack, params["emb_tab"], params["wqkv"], params["wo"],
      params["w1"], params["w2"], params["lvec"], params["head"])
    return out[:, :N_CLASSES]


if __name__ == "__main__":
    key = jax.random.PRNGKey(0)
    pkey, dkey = jax.random.split(key)
    params = init_params(pkey)

    B, S = 2, 8
    input_ids = jax.random.randint(dkey, (B, S), 0, VOCAB, dtype=jnp.int32)
    attention_mask = jnp.ones((B, S), jnp.int32).at[1, 6:].set(0)  # second sample padded

    logits = spam_classifier_forward(params, input_ids, attention_mask)
    logits = jax.block_until_ready(logits)
    assert logits.shape == (B, N_CLASSES)
    assert bool(jnp.all(jnp.isfinite(logits)))
    print("KERNEL_OK")
</pallas_src>

<mosaic_0001>
module attributes {stable_mosaic.version = 11 : i64} {
  func.func @fused_forward_kernel(%arg0: memref<16x3xi32, #tpu.memory_space<vmem>>, %arg1: memref<2x16xi32, #tpu.memory_space<vmem>>, %arg2: memref<82x32xf32, #tpu.memory_space<vmem>>, %arg3: memref<2x32x96xf32, #tpu.memory_space<vmem>>, %arg4: memref<2x32x32xf32, #tpu.memory_space<vmem>>, %arg5: memref<2x32x64xf32, #tpu.memory_space<vmem>>, %arg6: memref<2x64x32xf32, #tpu.memory_space<vmem>>, %arg7: memref<2x8x96xf32, #tpu.memory_space<vmem>>, %arg8: memref<2x40x128xf32, #tpu.memory_space<vmem>>, %arg9: memref<2x128xf32, #tpu.memory_space<vmem>>) attributes {dimension_semantics = [], scalar_prefetch = 0 : i64, scratch_operands = 0 : i64, tpu.core_type = #tpu.core_type<tc>} {
    %c0 = arith.constant 0 : index
    %c0_0 = arith.constant 0 : index
    %0 = vector.load %arg0[%c0, %c0_0] : memref<16x3xi32, #tpu.memory_space<vmem>>, vector<16x3xi32>
    %c0_1 = arith.constant 0 : index
    %c0_2 = arith.constant 0 : index
    %1 = vector.load %arg1[%c0_1, %c0_2] : memref<2x16xi32, #tpu.memory_space<vmem>>, vector<2x16xi32>
    %c0_3 = arith.constant 0 : index
    %c0_4 = arith.constant 0 : index
    %2 = vector.load %arg2[%c0_3, %c0_4] : memref<82x32xf32, #tpu.memory_space<vmem>>, vector<82x32xf32>
    %3 = tpu.iota {dimensions = array<i32: 1>} : vector<16x80xi32>
    %4 = vector.extract_strided_slice %0 {offsets = [0, 0], sizes = [16, 1], strides = [1, 1]} : vector<16x3xi32> to vector<16x1xi32>
    %5 = vector.broadcast %4 : vector<16x1xi32> to vector<16x80xi32>
    %6 = arith.cmpi eq, %3, %5 : vector<16x80xi32>
    %7 = vector.extract_strided_slice %0 {offsets = [0, 1], sizes = [16, 1], strides = [1, 1]} : vector<16x3xi32> to vector<16x1xi32>
    %8 = vector.broadcast %7 : vector<16x1xi32> to vector<16x80xi32>
    %9 = arith.cmpi eq, %3, %8 : vector<16x80xi32>
    %10 = arith.ori %6, %9 : vector<16x80xi1>
    %11 = arith.extui %10 : vector<16x80xi1> to vector<16x80xi32>
    %12 = arith.sitofp %11 : vector<16x80xi32> to vector<16x80xf32>
    %13 = vector.extract_strided_slice %2 {offsets = [0, 0], sizes = [80, 32], strides = [1, 1]} : vector<82x32xf32> to vector<80x32xf32>
    %cst = arith.constant dense<0.000000e+00> : vector<16x32xf32>
    %14 = tpu.matmul %12, %13, %cst {dimension_numbers = #tpu.dot_dimension_numbers<[1], [0], [0], [1], [0, 0, 1, 1], [], []>} : vector<16x80xf32>, vector<80x32xf32>, vector<16x32xf32> -> vector<16x32xf32>
    %15 = vector.extract_strided_slice %2 {offsets = [80, 0], sizes = [1, 32], strides = [1, 1]} : vector<82x32xf32> to vector<1x32xf32>
    %16 = vector.shape_cast %15 : vector<1x32xf32> to vector<32xf32>
    %17 = vector.extract_strided_slice %2 {offsets = [81, 0], sizes = [1, 32], strides = [1, 1]} : vector<82x32xf32> to vector<1x32xf32>
    %18 = vector.shape_cast %17 : vector<1x32xf32> to vector<32xf32>
    %cst_5 = arith.constant dense<0.000000e+00> : vector<16xf32>
    %19 = vector.multi_reduction <add>, %14, %cst_5 [1] : vector<16x32xf32> to vector<16xf32>
    %20 = vector.shape_cast %19 : vector<16xf32> to vector<16x1xf32>
    %cst_6 = arith.constant 3.200000e+01 : f32
    %21 = vector.broadcast %cst_6 : f32 to vector<16x1xf32>
    %22 = arith.divf %20, %21 : vector<16x1xf32>
    %23 = vector.broadcast %22 : vector<16x1xf32> to vector<16x32xf32>
    %24 = arith.subf %14, %23 : vector<16x32xf32>
    %25 = arith.mulf %24, %24 : vector<16x32xf32>
    %cst_7 = arith.constant dense<0.000000e+00> : vector<16xf32>
    %26 = vector.multi_reduction <add>, %25, %cst_7 [1] : vector<16x32xf32> to vector<16xf32>
    %27 = vector.shape_cast %26 : vector<16xf32> to vector<16x1xf32>
    %cst_8 = arith.constant 3.200000e+01 : f32
    %28 = vector.broadcast %cst_8 : f32 to vector<16x1xf32>
    %29 = arith.divf %27, %28 : vector<16x1xf32>
    %30 = vector.broadcast %22 : vector<16x1xf32> to vector<16x32xf32>
    %31 = arith.subf %14, %30 : vector<16x32xf32>
    %cst_9 = arith.constant 9.99999996E-13 : f32
    %32 = vector.broadcast %cst_9 : f32 to vector<16x1xf32>
    %33 = arith.addf %29, %32 : vector<16x1xf32>
    %34 = math.rsqrt %33 : vector<16x1xf32>
    %35 = vector.broadcast %34 : vector<16x1xf32> to vector<16x32xf32>
    %36 = arith.mulf %31, %35 : vector<16x32xf32>
    %37 = vector.shape_cast %16 : vector<32xf32> to vector<1x32xf32>
    %38 = vector.broadcast %37 : vector<1x32xf32> to vector<16x32xf32>
    %39 = arith.mulf %36, %38 : vector<16x32xf32>
    %40 = vector.shape_cast %18 : vector<32xf32> to vector<1x32xf32>
    %41 = vector.broadcast %40 : vector<1x32xf32> to vector<16x32xf32>
    %42 = arith.addf %39, %41 : vector<16x32xf32>
    %43 = vector.extract_strided_slice %0 {offsets = [0, 2], sizes = [16, 1], strides = [1, 1]} : vector<16x3xi32> to vector<16x1xi32>
    %44 = vector.extract_strided_slice %1 {offsets = [1, 0], sizes = [1, 16], strides = [1, 1]} : vector<2x16xi32> to vector<1x16xi32>
    %45 = vector.broadcast %43 : vector<16x1xi32> to vector<16x16xi32>
    %46 = vector.broadcast %44 : vector<1x16xi32> to vector<16x16xi32>
    %47 = arith.cmpi eq, %45, %46 : vector<16x16xi32>
    %48 = vector.extract_strided_slice %1 {offsets = [0, 0], sizes = [1, 16], strides = [1, 1]} : vector<2x16xi32> to vector<1x16xi32>
    %c0_i32 = arith.constant 0 : i32
    %49 = vector.broadcast %c0_i32 : i32 to vector<1x16xi32>
    %50 = arith.cmpi sgt, %48, %49 : vector<1x16xi32>
    %51 = vector.broadcast %50 : vector<1x16xi1> to vector<16x16xi1>
    %52 = arith.andi %47, %51 : vector<16x16xi1>
    %cst_10 = arith.constant 0.000000e+00 : f32
    %cst_11 = arith.constant -1.000000e+09 : f32
    %53 = vector.broadcast %cst_10 : f32 to vector<16x16xf32>
    %54 = vector.broadcast %cst_11 : f32 to vector<16x16xf32>
    %55 = arith.select %52, %53, %54 : vector<16x16xi1>, vector<16x16xf32>
    %56 = vector.shape_cast %55 : vector<16x16xf32> to vector<1x16x16xf32>
    %57 = vector.shape_cast %56 : vector<1x16x16xf32> to vector<1x16x16xf32>
    %58 = vector.broadcast %57 : vector<1x16x16xf32> to vector<2x16x16xf32>
    %c0_12 = arith.constant 0 : index
    %c0_13 = arith.constant 0 : index
    %c0_14 = arith.constant 0 : index
    %59 = vector.load %arg7[%c0_12, %c0_13, %c0_14] : memref<2x8x96xf32, #tpu.memory_space<vmem>>, vector<1x8x96xf32>
    %60 = vector.shape_cast %59 : vector<1x8x96xf32> to vector<8x96xf32>
    %c0_15 = arith.constant 0 : index
    %c0_16 = arith.constant 0 : index
    %c0_17 = arith.constant 0 : index
    %61 = vector.load %arg3[%c0_15, %c0_16, %c0_17] : memref<2x32x96xf32, #tpu.memory_space<vmem>>, vector<1x32x96xf32>
    %62 = vector.shape_cast %61 : vector<1x32x96xf32> to vector<32x96xf32>
    %cst_18 = arith.constant dense<0.000000e+00> : vector<16x96xf32>
    %63 = tpu.matmul %42, %62, %cst_18 {dimension_numbers = #tpu.dot_dimension_numbers<[1], [0], [0], [1], [0, 0, 1, 1], [], []>} : vector<16x32xf32>, vector<32x96xf32>, vector<16x96xf32> -> vector<16x96xf32>
    %64 = vector.extract_strided_slice %60 {offsets = [0, 0], sizes = [1, 96], strides = [1, 1]} : vector<8x96xf32> to vector<1x96xf32>
    %65 = vector.shape_cast %64 : vector<1x96xf32> to vector<96xf32>
    %66 = vector.shape_cast %65 : vector<96xf32> to vector<1x96xf32>
    %67 = vector.broadcast %66 : vector<1x96xf32> to vector<16x96xf32>
    %68 = arith.addf %63, %67 : vector<16x96xf32>
    %69 = vector.extract_strided_slice %68 {offsets = [0, 0], sizes = [16, 16], strides = [1, 1]} : vector<16x96xf32> to vector<16x16xf32>
    %70 = vector.extract_strided_slice %68 {offsets = [0, 16], sizes = [16, 16], strides = [1, 1]} : vector<16x96xf32> to vector<16x16xf32>
    %71 = vector.shape_cast %69 : vector<16x16xf32> to vector<1x16x16xf32>
    %72 = vector.shape_cast %70 : vector<16x16xf32> to vector<1x16x16xf32>
    %73 = tpu.concatenate %71, %72 in 0 : vector<1x16x16xf32>, vector<1x16x16xf32> -> vector<2x16x16xf32>
    %74 = vector.extract_strided_slice %68 {offsets = [0, 32], sizes = [16, 16], strides = [1, 1]} : vector<16x96xf32> to vector<16x16xf32>
    %75 = vector.extract_strided_slice %68 {offsets = [0, 48], sizes = [16, 16], strides = [1, 1]} : vector<16x96xf32> to vector<16x16xf32>
    %76 = vector.shape_cast %74 : vector<16x16xf32> to vector<1x16x16xf32>
    %77 = vector.shape_cast %75 : vector<16x16xf32> to vector<1x16x16xf32>
    %78 = tpu.concatenate %76, %77 in 0 : vector<1x16x16xf32>, vector<1x16x16xf32> -> vector<2x16x16xf32>
    %79 = vector.extract_strided_slice %68 {offsets = [0, 64], sizes = [16, 16], strides = [1, 1]} : vector<16x96xf32> to vector<16x16xf32>
    %80 = vector.extract_strided_slice %68 {offsets = [0, 80], sizes = [16, 16], strides = [1, 1]} : vector<16x96xf32> to vector<16x16xf32>
    %81 = vector.shape_cast %79 : vector<16x16xf32> to vector<1x16x16xf32>
    %82 = vector.shape_cast %80 : vector<16x16xf32> to vector<1x16x16xf32>
    %83 = tpu.concatenate %81, %82 in 0 : vector<1x16x16xf32>, vector<1x16x16xf32> -> vector<2x16x16xf32>
    "tpu.trace_start"() <{level = 10 : i32, message = "hqd,hkd->hqk"}> : () -> ()
    %cst_19 = arith.constant dense<0.000000e+00> : vector<2x16x16xf32>
    %84 = tpu.matmul %73, %78, %cst_19 {dimension_numbers = #tpu.dot_dimension_numbers<[2], [2], [1], [1], [0, 0, 0, 1, 1, 1], [0], [0]>} : vector<2x16x16xf32>, vector<2x16x16xf32>, vector<2x16x16xf32> -> vector<2x16x16xf32>
    "tpu.trace_stop"() : () -> ()
    %cst_20 = arith.constant 2.500000e-01 : f32
    %85 = vector.broadcast %cst_20 : f32 to vector<2x16x16xf32>
    %86 = arith.mulf %84, %85 : vector<2x16x16xf32>
    %87 = arith.addf %86, %58 : vector<2x16x16xf32>
    %cst_21 = arith.constant dense<0xFF800000> : vector<2x16xf32>
    %88 = vector.multi_reduction <maximumf>, %87, %cst_21 [2] : vector<2x16x16xf32> to vector<2x16xf32>
    %89 = vector.shape_cast %88 : vector<2x16xf32> to vector<2x16x1xf32>
    %90 = vector.broadcast %89 : vector<2x16x1xf32> to vector<2x16x16xf32>
    %91 = arith.subf %87, %90 : vector<2x16x16xf32>
    %92 = math.exp %91 : vector<2x16x16xf32>
    %cst_22 = arith.constant dense<0.000000e+00> : vector<2x16xf32>
    %93 = vector.multi_reduction <add>, %92, %cst_22 [2] : vector<2x16x16xf32> to vector<2x16xf32>
    %94 = vector.shape_cast %93 : vector<2x16xf32> to vector<2x16x1xf32>
    %95 = tpu.reciprocal %94 {approx = true} : vector<2x16x1xf32> -> vector<2x16x1xf32>
    %96 = vector.broadcast %95 : vector<2x16x1xf32> to vector<2x16x16xf32>
    %97 = arith.mulf %92, %96 : vector<2x16x16xf32>
    "tpu.trace_start"() <{level = 10 : i32, message = "hqk,hkd->hqd"}> : () -> ()
    %cst_23 = arith.constant dense<0.000000e+00> : vector<2x16x16xf32>
    %98 = tpu.matmul %97, %83, %cst_23 {dimension_numbers = #tpu.dot_dimension_numbers<[2], [1], [1], [2], [0, 0, 0, 1, 1, 2], [0], [0]>} : vector<2x16x16xf32>, vector<2x16x16xf32>, vector<2x16x16xf32> -> vector<2x16x16xf32>
    "tpu.trace_stop"() : () -> ()
    %99 = vector.extract_strided_slice %98 {offsets = [0, 0, 0], sizes = [1, 16, 16], strides = [1, 1, 1]} : vector<2x16x16xf32> to vector<1x16x16xf32>
    %100 = vector.shape_cast %99 : vector<1x16x16xf32> to vector<16x16xf32>
    %101 = vector.extract_strided_slice %98 {offsets = [1, 0, 0], sizes = [1, 16, 16], strides = [1, 1, 1]} : vector<2x16x16xf32> to vector<1x16x16xf32>
    %102 = vector.shape_cast %101 : vector<1x16x16xf32> to vector<16x16xf32>
    %103 = tpu.concatenate %100, %102 in 1 : vector<16x16xf32>, vector<16x16xf32> -> vector<16x32xf32>
    %c0_24 = arith.constant 0 : index
    %c0_25 = arith.constant 0 : index
    %c0_26 = arith.constant 0 : index
    %104 = vector.load %arg4[%c0_24, %c0_25, %c0_26] : memref<2x32x32xf32, #tpu.memory_space<vmem>>, vector<1x32x32xf32>
    %105 = vector.shape_cast %104 : vector<1x32x32xf32> to vector<32x32xf32>
    %cst_27 = arith.constant dense<0.000000e+00> : vector<16x32xf32>
    %106 = tpu.matmul %103, %105, %cst_27 {dimension_numbers = #tpu.dot_dimension_numbers<[1], [0], [0], [1], [0, 0, 1, 1], [], []>} : vector<16x32xf32>, vector<32x32xf32>, vector<16x32xf32> -> vector<16x32xf32>
    %107 = vector.extract_strided_slice %60 {offsets = [1, 0], sizes = [1, 32], strides = [1, 1]} : vector<8x96xf32> to vector<1x32xf32>
    %108 = vector.shape_cast %107 : vector<1x32xf32> to vector<32xf32>
    %109 = vector.shape_cast %108 : vector<32xf32> to vector<1x32xf32>
    %110 = vector.broadcast %109 : vector<1x32xf32> to vector<16x32xf32>
    %111 = arith.addf %106, %110 : vector<16x32xf32>
    %112 = arith.addf %42, %111 : vector<16x32xf32>
    %113 = vector.extract_strided_slice %60 {offsets = [4, 0], sizes = [1, 32], strides = [1, 1]} : vector<8x96xf32> to vector<1x32xf32>
    %114 = vector.shape_cast %113 : vector<1x32xf32> to vector<32xf32>
    %115 = vector.extract_strided_slice %60 {offsets = [5, 0], sizes = [1, 32], strides = [1, 1]} : vector<8x96xf32> to vector<1x32xf32>
    %116 = vector.shape_cast %115 : vector<1x32xf32> to vector<32xf32>
    %cst_28 = arith.constant dense<0.000000e+00> : vector<16xf32>
    %117 = vector.multi_reduction <add>, %112, %cst_28 [1] : vector<16x32xf32> to vector<16xf32>
    %118 = vector.shape_cast %117 : vector<16xf32> to vector<16x1xf32>
    %cst_29 = arith.constant 3.200000e+01 : f32
    %119 = vector.broadcast %cst_29 : f32 to vector<16x1xf32>
    %120 = arith.divf %118, %119 : vector<16x1xf32>
    %121 = vector.broadcast %120 : vector<16x1xf32> to vector<16x32xf32>
    %122 = arith.subf %112, %121 : vector<16x32xf32>
    %123 = arith.mulf %122, %122 : vector<16x32xf32>
    %cst_30 = arith.constant dense<0.000000e+00> : vector<16xf32>
    %124 = vector.multi_reduction <add>, %123, %cst_30 [1] : vector<16x32xf32> to vector<16xf32>
    %125 = vector.shape_cast %124 : vector<16xf32> to vector<16x1xf32>
    %cst_31 = arith.constant 3.200000e+01 : f32
    %126 = vector.broadcast %cst_31 : f32 to vector<16x1xf32>
    %127 = arith.divf %125, %126 : vector<16x1xf32>
    %128 = vector.broadcast %120 : vector<16x1xf32> to vector<16x32xf32>
    %129 = arith.subf %112, %128 : vector<16x32xf32>
    %cst_32 = arith.constant 9.99999996E-13 : f32
    %130 = vector.broadcast %cst_32 : f32 to vector<16x1xf32>
    %131 = arith.addf %127, %130 : vector<16x1xf32>
    %132 = math.rsqrt %131 : vector<16x1xf32>
    %133 = vector.broadcast %132 : vector<16x1xf32> to vector<16x32xf32>
    %134 = arith.mulf %129, %133 : vector<16x32xf32>
    %135 = vector.shape_cast %114 : vector<32xf32> to vector<1x32xf32>
    %136 = vector.broadcast %135 : vector<1x32xf32> to vector<16x32xf32>
    %137 = arith.mulf %134, %136 : vector<16x32xf32>
    %138 = vector.shape_cast %116 : vector<32xf32> to vector<1x32xf32>
    %139 = vector.broadcast %138 : vector<1x32xf32> to vector<16x32xf32>
    %140 = arith.addf %137, %139 : vector<16x32xf32>
    %c0_33 = arith.constant 0 : index
    %c0_34 = arith.constant 0 : index
    %c0_35 = arith.constant 0 : index
    %141 = vector.load %arg5[%c0_33, %c0_34, %c0_35] : memref<2x32x64xf32, #tpu.memory_space<vmem>>, vector<1x32x64xf32>
    %142 = vector.shape_cast %141 : vector<1x32x64xf32> to vector<32x64xf32>
    %cst_36 = arith.constant dense<0.000000e+00> : vector<16x64xf32>
    %143 = tpu.matmul %140, %142, %cst_36 {dimension_numbers = #tpu.dot_dimension_numbers<[1], [0], [0], [1], [0, 0, 1, 1], [], []>} : vector<16x32xf32>, vector<32x64xf32>, vector<16x64xf32> -> vector<16x64xf32>
    %144 = vector.extract_strided_slice %60 {offsets = [2, 0], sizes = [1, 64], strides = [1, 1]} : vector<8x96xf32> to vector<1x64xf32>
    %145 = vector.shape_cast %144 : vector<1x64xf32> to vector<64xf32>
    %146 = vector.shape_cast %145 : vector<64xf32> to vector<1x64xf32>
    %147 = vector.broadcast %146 : vector<1x64xf32> to vector<16x64xf32>
    %148 = arith.addf %143, %147 : vector<16x64xf32>
    %cst_37 = arith.constant 5.000000e-01 : f32
    %149 = vector.broadcast %cst_37 : f32 to vector<16x64xf32>
    %150 = arith.mulf %149, %148 : vector<16x64xf32>
    %cst_38 = arith.constant 4.471500e-02 : f32
    %151 = vector.broadcast %cst_38 : f32 to vector<16x64xf32>
    %152 = arith.mulf %151, %148 : vector<16x64xf32>
    %153 = arith.mulf %152, %148 : vector<16x64xf32>
    %154 = arith.mulf %153, %148 : vector<16x64xf32>
    %155 = arith.addf %148, %154 : vector<16x64xf32>
    %cst_39 = arith.constant 0.797884583 : f32
    %156 = vector.broadcast %cst_39 : f32 to vector<16x64xf32>
    %157 = arith.mulf %156, %155 : vector<16x64xf32>
    %158 = math.tanh %157 : vector<16x64xf32>
    %cst_40 = arith.constant 1.000000e+00 : f32
    %159 = vector.broadcast %cst_40 : f32 to vector<16x64xf32>
    %160 = arith.addf %159, %158 : vector<16x64xf32>
    %161 = arith.mulf %150, %160 : vector<16x64xf32>
    %c0_41 = arith.constant 0 : index
    %c0_42 = arith.constant 0 : index
    %c0_43 = arith.constant 0 : index
    %162 = vector.load %arg6[%c0_41, %c0_42, %c0_43] : memref<2x64x32xf32, #tpu.memory_space<vmem>>, vector<1x64x32xf32>
    %163 = vector.shape_cast %162 : vector<1x64x32xf32> to vector<64x32xf32>
    %cst_44 = arith.constant dense<0.000000e+00> : vector<16x32xf32>
    %164 = tpu.matmul %161, %163, %cst_44 {dimension_numbers = #tpu.dot_dimension_numbers<[1], [0], [0], [1], [0, 0, 1, 1], [], []>} : vector<16x64xf32>, vector<64x32xf32>, vector<16x32xf32> -> vector<16x32xf32>
    %165 = vector.extract_strided_slice %60 {offsets = [3, 0], sizes = [1, 32], strides = [1, 1]} : vector<8x96xf32> to vector<1x32xf32>
    %166 = vector.shape_cast %165 : vector<1x32xf32> to vector<32xf32>
    %167 = vector.shape_cast %166 : vector<32xf32> to vector<1x32xf32>
    %168 = vector.broadcast %167 : vector<1x32xf32> to vector<16x32xf32>
    %169 = arith.addf %164, %168 : vector<16x32xf32>
    %170 = arith.addf %140, %169 : vector<16x32xf32>
    %171 = vector.extract_strided_slice %60 {offsets = [6, 0], sizes = [1, 32], strides = [1, 1]} : vector<8x96xf32> to vector<1x32xf32>
    %172 = vector.shape_cast %171 : vector<1x32xf32> to vector<32xf32>
    %173 = vector.extract_strided_slice %60 {offsets = [7, 0], sizes = [1, 32], strides = [1, 1]} : vector<8x96xf32> to vector<1x32xf32>
    %174 = vector.shape_cast %173 : vector<1x32xf32> to vector<32xf32>
    %cst_45 = arith.constant dense<0.000000e+00> : vector<16xf32>
    %175 = vector.multi_reduction <add>, %170, %cst_45 [1] : vector<16x32xf32> to vector<16xf32>
    %176 = vector.shape_cast %175 : vector<16xf32> to vector<16x1xf32>
    %cst_46 = arith.constant 3.200000e+01 : f32
    %177 = vector.broadcast %cst_46 : f32 to vector<16x1xf32>
    %178 = arith.divf %176, %177 : vector<16x1xf32>
    %179 = vector.broadcast %178 : vector<16x1xf32> to vector<16x32xf32>
    %180 = arith.subf %170, %179 : vector<16x32xf32>
    %181 = arith.mulf %180, %180 : vector<16x32xf32>
    %cst_47 = arith.constant dense<0.000000e+00> : vector<16xf32>
    %182 = vector.multi_reduction <add>, %181, %cst_47 [1] : vector<16x32xf32> to vector<16xf32>
    %183 = vector.shape_cast %182 : vector<16xf32> to vector<16x1xf32>
    %cst_48 = arith.constant 3.200000e+01 : f32
    %184 = vector.broadcast %cst_48 : f32 to vector<16x1xf32>
    %185 = arith.divf %183, %184 : vector<16x1xf32>
    %186 = vector.broadcast %178 : vector<16x1xf32> to vector<16x32xf32>
    %187 = arith.subf %170, %186 : vector<16x32xf32>
    %cst_49 = arith.constant 9.99999996E-13 : f32
    %188 = vector.broadcast %cst_49 : f32 to vector<16x1xf32>
    %189 = arith.addf %185, %188 : vector<16x1xf32>
    %190 = math.rsqrt %189 : vector<16x1xf32>
    %191 = vector.broadcast %190 : vector<16x1xf32> to vector<16x32xf32>
    %192 = arith.mulf %187, %191 : vector<16x32xf32>
    %193 = vector.shape_cast %172 : vector<32xf32> to vector<1x32xf32>
    %194 = vector.broadcast %193 : vector<1x32xf32> to vector<16x32xf32>
    %195 = arith.mulf %192, %194 : vector<16x32xf32>
    %196 = vector.shape_cast %174 : vector<32xf32> to vector<1x32xf32>
    %197 = vector.broadcast %196 : vector<1x32xf32> to vector<16x32xf32>
    %198 = arith.addf %195, %197 : vector<16x32xf32>
    %c1 = arith.constant 1 : index
    %c0_50 = arith.constant 0 : index
    %c0_51 = arith.constant 0 : index
    %199 = vector.load %arg7[%c1, %c0_50, %c0_51] : memref<2x8x96xf32, #tpu.memory_space<vmem>>, vector<1x8x96xf32>
    %200 = vector.shape_cast %199 : vector<1x8x96xf32> to vector<8x96xf32>
    %c1_52 = arith.constant 1 : index
    %c0_53 = arith.constant 0 : index
    %c0_54 = arith.constant 0 : index
    %201 = vector.load %arg3[%c1_52, %c0_53, %c0_54] : memref<2x32x96xf32, #tpu.memory_space<vmem>>, vector<1x32x96xf32>
    %202 = vector.shape_cast %201 : vector<1x32x96xf32> to vector<32x96xf32>
    %cst_55 = arith.constant dense<0.000000e+00> : vector<16x96xf32>
    %203 = tpu.matmul %198, %202, %cst_55 {dimension_numbers = #tpu.dot_dimension_numbers<[1], [0], [0], [1], [0, 0, 1, 1], [], []>} : vector<16x32xf32>, vector<32x96xf32>, vector<16x96xf32> -> vector<16x96xf32>
    %204 = vector.extract_strided_slice %200 {offsets = [0, 0], sizes = [1, 96], strides = [1, 1]} : vector<8x96xf32> to vector<1x96xf32>
    %205 = vector.shape_cast %204 : vector<1x96xf32> to vector<96xf32>
    %206 = vector.shape_cast %205 : vector<96xf32> to vector<1x96xf32>
    %207 = vector.broadcast %206 : vector<1x96xf32> to vector<16x96xf32>
    %208 = arith.addf %203, %207 : vector<16x96xf32>
    %209 = vector.extract_strided_slice %208 {offsets = [0, 0], sizes = [16, 16], strides = [1, 1]} : vector<16x96xf32> to vector<16x16xf32>
    %210 = vector.extract_strided_slice %208 {offsets = [0, 16], sizes = [16, 16], strides = [1, 1]} : vector<16x96xf32> to vector<16x16xf32>
    %211 = vector.shape_cast %209 : vector<16x16xf32> to vector<1x16x16xf32>
    %212 = vector.shape_cast %210 : vector<16x16xf32> to vector<1x16x16xf32>
    %213 = tpu.concatenate %211, %212 in 0 : vector<1x16x16xf32>, vector<1x16x16xf32> -> vector<2x16x16xf32>
    %214 = vector.extract_strided_slice %208 {offsets = [0, 32], sizes = [16, 16], strides = [1, 1]} : vector<16x96xf32> to vector<16x16xf32>
    %215 = vector.extract_strided_slice %208 {offsets = [0, 48], sizes = [16, 16], strides = [1, 1]} : vector<16x96xf32> to vector<16x16xf32>
    %216 = vector.shape_cast %214 : vector<16x16xf32> to vector<1x16x16xf32>
    %217 = vector.shape_cast %215 : vector<16x16xf32> to vector<1x16x16xf32>
    %218 = tpu.concatenate %216, %217 in 0 : vector<1x16x16xf32>, vector<1x16x16xf32> -> vector<2x16x16xf32>
    %219 = vector.extract_strided_slice %208 {offsets = [0, 64], sizes = [16, 16], strides = [1, 1]} : vector<16x96xf32> to vector<16x16xf32>
    %220 = vector.extract_strided_slice %208 {offsets = [0, 80], sizes = [16, 16], strides = [1, 1]} : vector<16x96xf32> to vector<16x16xf32>
    %221 = vector.shape_cast %219 : vector<16x16xf32> to vector<1x16x16xf32>
    %222 = vector.shape_cast %220 : vector<16x16xf32> to vector<1x16x16xf32>
    %223 = tpu.concatenate %221, %222 in 0 : vector<1x16x16xf32>, vector<1x16x16xf32> -> vector<2x16x16xf32>
    "tpu.trace_start"() <{level = 10 : i32, message = "hqd,hkd->hqk"}> : () -> ()
    %cst_56 = arith.constant dense<0.000000e+00> : vector<2x16x16xf32>
    %224 = tpu.matmul %213, %218, %cst_56 {dimension_numbers = #tpu.dot_dimension_numbers<[2], [2], [1], [1], [0, 0, 0, 1, 1, 1], [0], [0]>} : vector<2x16x16xf32>, vector<2x16x16xf32>, vector<2x16x16xf32> -> vector<2x16x16xf32>
    "tpu.trace_stop"() : () -> ()
    %cst_57 = arith.constant 2.500000e-01 : f32
    %225 = vector.broadcast %cst_57 : f32 to vector<2x16x16xf32>
    %226 = arith.mulf %224, %225 : vector<2x16x16xf32>
    %227 = arith.addf %226, %58 : vector<2x16x16xf32>
    %cst_58 = arith.constant dense<0xFF800000> : vector<2x16xf32>
    %228 = vector.multi_reduction <maximumf>, %227, %cst_58 [2] : vector<2x16x16xf32> to vector<2x16xf32>
    %229 = vector.shape_cast %228 : vector<2x16xf32> to vector<2x16x1xf32>
    %230 = vector.broadcast %229 : vector<2x16x1xf32> to vector<2x16x16xf32>
    %231 = arith.subf %227, %230 : vector<2x16x16xf32>
    %232 = math.exp %231 : vector<2x16x16xf32>
    %cst_59 = arith.constant dense<0.000000e+00> : vector<2x16xf32>
    %233 = vector.multi_reduction <add>, %232, %cst_59 [2] : vector<2x16x16xf32> to vector<2x16xf32>
    %234 = vector.shape_cast %233 : vector<2x16xf32> to vector<2x16x1xf32>
    %235 = tpu.reciprocal %234 {approx = true} : vector<2x16x1xf32> -> vector<2x16x1xf32>
    %236 = vector.broadcast %235 : vector<2x16x1xf32> to vector<2x16x16xf32>
    %237 = arith.mulf %232, %236 : vector<2x16x16xf32>
    "tpu.trace_start"() <{level = 10 : i32, message = "hqk,hkd->hqd"}> : () -> ()
    %cst_60 = arith.constant dense<0.000000e+00> : vector<2x16x16xf32>
    %238 = tpu.matmul %237, %223, %cst_60 {dimension_numbers = #tpu.dot_dimension_numbers<[2], [1], [1], [2], [0, 0, 0, 1, 1, 2], [0], [0]>} : vector<2x16x16xf32>, vector<2x16x16xf32>, vector<2x16x16xf32> -> vector<2x16x16xf32>
    "tpu.trace_stop"() : () -> ()
    %239 = vector.extract_strided_slice %238 {offsets = [0, 0, 0], sizes = [1, 16, 16], strides = [1, 1, 1]} : vector<2x16x16xf32> to vector<1x16x16xf32>
    %240 = vector.shape_cast %239 : vector<1x16x16xf32> to vector<16x16xf32>
    %241 = vector.extract_strided_slice %238 {offsets = [1, 0, 0], sizes = [1, 16, 16], strides = [1, 1, 1]} : vector<2x16x16xf32> to vector<1x16x16xf32>
    %242 = vector.shape_cast %241 : vector<1x16x16xf32> to vector<16x16xf32>
    %243 = tpu.concatenate %240, %242 in 1 : vector<16x16xf32>, vector<16x16xf32> -> vector<16x32xf32>
    %c1_61 = arith.constant 1 : index
    %c0_62 = arith.constant 0 : index
    %c0_63 = arith.constant 0 : index
    %244 = vector.load %arg4[%c1_61, %c0_62, %c0_63] : memref<2x32x32xf32, #tpu.memory_space<vmem>>, vector<1x32x32xf32>
    %245 = vector.shape_cast %244 : vector<1x32x32xf32> to vector<32x32xf32>
    %cst_64 = arith.constant dense<0.000000e+00> : vector<16x32xf32>
    %246 = tpu.matmul %243, %245, %cst_64 {dimension_numbers = #tpu.dot_dimension_numbers<[1], [0], [0], [1], [0, 0, 1, 1], [], []>} : vector<16x32xf32>, vector<32x32xf32>, vector<16x32xf32> -> vector<16x32xf32>
    %247 = vector.extract_strided_slice %200 {offsets = [1, 0], sizes = [1, 32], strides = [1, 1]} : vector<8x96xf32> to vector<1x32xf32>
    %248 = vector.shape_cast %247 : vector<1x32xf32> to vector<32xf32>
    %249 = vector.shape_cast %248 : vector<32xf32> to vector<1x32xf32>
    %250 = vector.broadcast %249 : vector<1x32xf32> to vector<16x32xf32>
    %251 = arith.addf %246, %250 : vector<16x32xf32>
    %252 = arith.addf %198, %251 : vector<16x32xf32>
    %253 = vector.extract_strided_slice %200 {offsets = [4, 0], sizes = [1, 32], strides = [1, 1]} : vector<8x96xf32> to vector<1x32xf32>
    %254 = vector.shape_cast %253 : vector<1x32xf32> to vector<32xf32>
    %255 = vector.extract_strided_slice %200 {offsets = [5, 0], sizes = [1, 32], strides = [1, 1]} : vector<8x96xf32> to vector<1x32xf32>
    %256 = vector.shape_cast %255 : vector<1x32xf32> to vector<32xf32>
    %cst_65 = arith.constant dense<0.000000e+00> : vector<16xf32>
    %257 = vector.multi_reduction <add>, %252, %cst_65 [1] : vector<16x32xf32> to vector<16xf32>
    %258 = vector.shape_cast %257 : vector<16xf32> to vector<16x1xf32>
    %cst_66 = arith.constant 3.200000e+01 : f32
    %259 = vector.broadcast %cst_66 : f32 to vector<16x1xf32>
    %260 = arith.divf %258, %259 : vector<16x1xf32>
    %261 = vector.broadcast %260 : vector<16x1xf32> to vector<16x32xf32>
    %262 = arith.subf %252, %261 : vector<16x32xf32>
    %263 = arith.mulf %262, %262 : vector<16x32xf32>
    %cst_67 = arith.constant dense<0.000000e+00> : vector<16xf32>
    %264 = vector.multi_reduction <add>, %263, %cst_67 [1] : vector<16x32xf32> to vector<16xf32>
    %265 = vector.shape_cast %264 : vector<16xf32> to vector<16x1xf32>
    %cst_68 = arith.constant 3.200000e+01 : f32
    %266 = vector.broadcast %cst_68 : f32 to vector<16x1xf32>
    %267 = arith.divf %265, %266 : vector<16x1xf32>
    %268 = vector.broadcast %260 : vector<16x1xf32> to vector<16x32xf32>
    %269 = arith.subf %252, %268 : vector<16x32xf32>
    %cst_69 = arith.constant 9.99999996E-13 : f32
    %270 = vector.broadcast %cst_69 : f32 to vector<16x1xf32>
    %271 = arith.addf %267, %270 : vector<16x1xf32>
    %272 = math.rsqrt %271 : vector<16x1xf32>
    %273 = vector.broadcast %272 : vector<16x1xf32> to vector<16x32xf32>
    %274 = arith.mulf %269, %273 : vector<16x32xf32>
    %275 = vector.shape_cast %254 : vector<32xf32> to vector<1x32xf32>
    %276 = vector.broadcast %275 : vector<1x32xf32> to vector<16x32xf32>
    %277 = arith.mulf %274, %276 : vector<16x32xf32>
    %278 = vector.shape_cast %256 : vector<32xf32> to vector<1x32xf32>
    %279 = vector.broadcast %278 : vector<1x32xf32> to vector<16x32xf32>
    %280 = arith.addf %277, %279 : vector<16x32xf32>
    %c1_70 = arith.constant 1 : index
    %c0_71 = arith.constant 0 : index
    %c0_72 = arith.constant 0 : index
    %281 = vector.load %arg5[%c1_70, %c0_71, %c0_72] : memref<2x32x64xf32, #tpu.memory_space<vmem>>, vector<1x32x64xf32>
    %282 = vector.shape_cast %281 : vector<1x32x64xf32> to vector<32x64xf32>
    %cst_73 = arith.constant dense<0.000000e+00> : vector<16x64xf32>
    %283 = tpu.matmul %280, %282, %cst_73 {dimension_numbers = #tpu.dot_dimension_numbers<[1], [0], [0], [1], [0, 0, 1, 1], [], []>} : vector<16x32xf32>, vector<32x64xf32>, vector<16x64xf32> -> vector<16x64xf32>
    %284 = vector.extract_strided_slice %200 {offsets = [2, 0], sizes = [1, 64], strides = [1, 1]} : vector<8x96xf32> to vector<1x64xf32>
    %285 = vector.shape_cast %284 : vector<1x64xf32> to vector<64xf32>
    %286 = vector.shape_cast %285 : vector<64xf32> to vector<1x64xf32>
    %287 = vector.broadcast %286 : vector<1x64xf32> to vector<16x64xf32>
    %288 = arith.addf %283, %287 : vector<16x64xf32>
    %cst_74 = arith.constant 5.000000e-01 : f32
    %289 = vector.broadcast %cst_74 : f32 to vector<16x64xf32>
    %290 = arith.mulf %289, %288 : vector<16x64xf32>
    %cst_75 = arith.constant 4.471500e-02 : f32
    %291 = vector.broadcast %cst_75 : f32 to vector<16x64xf32>
    %292 = arith.mulf %291, %288 : vector<16x64xf32>
    %293 = arith.mulf %292, %288 : vector<16x64xf32>
    %294 = arith.mulf %293, %288 : vector<16x64xf32>
    %295 = arith.addf %288, %294 : vector<16x64xf32>
    %cst_76 = arith.constant 0.797884583 : f32
    %296 = vector.broadcast %cst_76 : f32 to vector<16x64xf32>
    %297 = arith.mulf %296, %295 : vector<16x64xf32>
    %298 = math.tanh %297 : vector<16x64xf32>
    %cst_77 = arith.constant 1.000000e+00 : f32
    %299 = vector.broadcast %cst_77 : f32 to vector<16x64xf32>
    %300 = arith.addf %299, %298 : vector<16x64xf32>
    %301 = arith.mulf %290, %300 : vector<16x64xf32>
    %c1_78 = arith.constant 1 : index
    %c0_79 = arith.constant 0 : index
    %c0_80 = arith.constant 0 : index
    %302 = vector.load %arg6[%c1_78, %c0_79, %c0_80] : memref<2x64x32xf32, #tpu.memory_space<vmem>>, vector<1x64x32xf32>
    %303 = vector.shape_cast %302 : vector<1x64x32xf32> to vector<64x32xf32>
    %cst_81 = arith.constant dense<0.000000e+00> : vector<16x32xf32>
    %304 = tpu.matmul %301, %303, %cst_81 {dimension_numbers = #tpu.dot_dimension_numbers<[1], [0], [0], [1], [0, 0, 1, 1], [], []>} : vector<16x64xf32>, vector<64x32xf32>, vector<16x32xf32> -> vector<16x32xf32>
    %305 = vector.extract_strided_slice %200 {offsets = [3, 0], sizes = [1, 32], strides = [1, 1]} : vector<8x96xf32> to vector<1x32xf32>
    %306 = vector.shape_cast %305 : vector<1x32xf32> to vector<32xf32>
    %307 = vector.shape_cast %306 : vector<32xf32> to vector<1x32xf32>
    %308 = vector.broadcast %307 : vector<1x32xf32> to vector<16x32xf32>
    %309 = arith.addf %304, %308 : vector<16x32xf32>
    %310 = arith.addf %280, %309 : vector<16x32xf32>
    %311 = vector.extract_strided_slice %200 {offsets = [6, 0], sizes = [1, 32], strides = [1, 1]} : vector<8x96xf32> to vector<1x32xf32>
    %312 = vector.shape_cast %311 : vector<1x32xf32> to vector<32xf32>
    %313 = vector.extract_strided_slice %200 {offsets = [7, 0], sizes = [1, 32], strides = [1, 1]} : vector<8x96xf32> to vector<1x32xf32>
    %314 = vector.shape_cast %313 : vector<1x32xf32> to vector<32xf32>
    %cst_82 = arith.constant dense<0.000000e+00> : vector<16xf32>
    %315 = vector.multi_reduction <add>, %310, %cst_82 [1] : vector<16x32xf32> to vector<16xf32>
    %316 = vector.shape_cast %315 : vector<16xf32> to vector<16x1xf32>
    %cst_83 = arith.constant 3.200000e+01 : f32
    %317 = vector.broadcast %cst_83 : f32 to vector<16x1xf32>
    %318 = arith.divf %316, %317 : vector<16x1xf32>
    %319 = vector.broadcast %318 : vector<16x1xf32> to vector<16x32xf32>
    %320 = arith.subf %310, %319 : vector<16x32xf32>
    %321 = arith.mulf %320, %320 : vector<16x32xf32>
    %cst_84 = arith.constant dense<0.000000e+00> : vector<16xf32>
    %322 = vector.multi_reduction <add>, %321, %cst_84 [1] : vector<16x32xf32> to vector<16xf32>
    %323 = vector.shape_cast %322 : vector<16xf32> to vector<16x1xf32>
    %cst_85 = arith.constant 3.200000e+01 : f32
    %324 = vector.broadcast %cst_85 : f32 to vector<16x1xf32>
    %325 = arith.divf %323, %324 : vector<16x1xf32>
    %326 = vector.broadcast %318 : vector<16x1xf32> to vector<16x32xf32>
    %327 = arith.subf %310, %326 : vector<16x32xf32>
    %cst_86 = arith.constant 9.99999996E-13 : f32
    %328 = vector.broadcast %cst_86 : f32 to vector<16x1xf32>
    %329 = arith.addf %325, %328 : vector<16x1xf32>
    %330 = math.rsqrt %329 : vector<16x1xf32>
    %331 = vector.broadcast %330 : vector<16x1xf32> to vector<16x32xf32>
    %332 = arith.mulf %327, %331 : vector<16x32xf32>
    %333 = vector.shape_cast %312 : vector<32xf32> to vector<1x32xf32>
    %334 = vector.broadcast %333 : vector<1x32xf32> to vector<16x32xf32>
    %335 = arith.mulf %332, %334 : vector<16x32xf32>
    %336 = vector.shape_cast %314 : vector<32xf32> to vector<1x32xf32>
    %337 = vector.broadcast %336 : vector<1x32xf32> to vector<16x32xf32>
    %338 = arith.addf %335, %337 : vector<16x32xf32>
    %339 = vector.shape_cast %338 : vector<16x32xf32> to vector<2x8x32xf32>
    %340 = vector.extract_strided_slice %339 {offsets = [0, 0, 0], sizes = [2, 1, 32], strides = [1, 1, 1]} : vector<2x8x32xf32> to vector<2x1x32xf32>
    %341 = vector.shape_cast %340 : vector<2x1x32xf32> to vector<2x32xf32>
    %c0_87 = arith.constant 0 : index
    %c0_88 = arith.constant 0 : index
    %c0_89 = arith.constant 0 : index
    %342 = vector.load %arg8[%c0_87, %c0_88, %c0_89] : memref<2x40x128xf32, #tpu.memory_space<vmem>>, vector<1x40x128xf32>
    %343 = vector.shape_cast %342 : vector<1x40x128xf32> to vector<40x128xf32>
    %344 = vector.extract_strided_slice %343 {offsets = [0, 0], sizes = [32, 32], strides = [1, 1]} : vector<40x128xf32> to vector<32x32xf32>
    %cst_90 = arith.constant dense<0.000000e+00> : vector<2x32xf32>
    %345 = tpu.matmul %341, %344, %cst_90 {dimension_numbers = #tpu.dot_dimension_numbers<[1], [0], [0], [1], [0, 0, 1, 1], [], []>} : vector<2x32xf32>, vector<32x32xf32>, vector<2x32xf32> -> vector<2x32xf32>
    %346 = vector.extract_strided_slice %343 {offsets = [32, 0], sizes = [1, 32], strides = [1, 1]} : vector<40x128xf32> to vector<1x32xf32>
    %347 = vector.shape_cast %346 : vector<1x32xf32> to vector<32xf32>
    %348 = vector.shape_cast %347 : vector<32xf32> to vector<1x32xf32>
    %349 = vector.broadcast %348 : vector<1x32xf32> to vector<2x32xf32>
    %350 = arith.addf %345, %349 : vector<2x32xf32>
    %351 = math.tanh %350 : vector<2x32xf32>
    %c1_91 = arith.constant 1 : index
    %c0_92 = arith.constant 0 : index
    %c0_93 = arith.constant 0 : index
    %352 = vector.load %arg8[%c1_91, %c0_92, %c0_93] : memref<2x40x128xf32, #tpu.memory_space<vmem>>, vector<1x40x128xf32>
    %353 = vector.shape_cast %352 : vector<1x40x128xf32> to vector<40x128xf32>
    %354 = vector.extract_strided_slice %353 {offsets = [0, 0], sizes = [32, 128], strides = [1, 1]} : vector<40x128xf32> to vector<32x128xf32>
    %cst_94 = arith.constant dense<0.000000e+00> : vector<2x128xf32>
    %355 = tpu.matmul %351, %354, %cst_94 {dimension_numbers = #tpu.dot_dimension_numbers<[1], [0], [0], [1], [0, 0, 1, 1], [], []>} : vector<2x32xf32>, vector<32x128xf32>, vector<2x128xf32> -> vector<2x128xf32>
    %356 = vector.extract_strided_slice %353 {offsets = [32, 0], sizes = [1, 128], strides = [1, 1]} : vector<40x128xf32> to vector<1x128xf32>
    %357 = vector.shape_cast %356 : vector<1x128xf32> to vector<128xf32>
    %358 = vector.shape_cast %357 : vector<128xf32> to vector<1x128xf32>
    %359 = vector.broadcast %358 : vector<1x128xf32> to vector<2x128xf32>
    %360 = arith.addf %355, %359 : vector<2x128xf32>
    %c0_95 = arith.constant 0 : index
    %c0_96 = arith.constant 0 : index
    %361 = vector.load %arg9[%c0_95, %c0_96] : memref<2x128xf32, #tpu.memory_space<vmem>>, vector<2x128xf32>
    tpu.vector_store %arg9[%c0_95, %c0_96], %360 {strides = array<i32>} : memref<2x128xf32, #tpu.memory_space<vmem>>, vector<2x128xf32>,
    return
  }
}

</mosaic_0001>

<llo_original>
// kernel: spam_classifier_forward.1
$region0: #{spam_classifier_forward.1}
  #allocation0 [shape = 'u32[]', space=smem, size = 0x4, offset = 0x4, fixed_abs, tag = 'smem constant byte address 0x4 - core index']
  #allocation1 [shape = 'u32[144,128]{1,0:T(1,128)}', space=vmem, size = 0x12000, scoped, tag = 'internal scratch']
  %s0 = inlined_call_operand.vmem [shape: s32[16,3], index: 0, kind: input, shape index: {}]
  %s1 = inlined_call_operand.vmem [shape: s32[2,16], index: 1, kind: input, shape index: {}]
  %s2 = inlined_call_operand.vmem [shape: f32[82,32], index: 2, kind: input, shape index: {}]
  %s3 = inlined_call_operand.vmem [shape: f32[2,32,96], index: 3, kind: input, shape index: {}]
  %s4 = inlined_call_operand.vmem [shape: f32[2,32,32], index: 4, kind: input, shape index: {}]
  %s5 = inlined_call_operand.vmem [shape: f32[2,32,64], index: 5, kind: input, shape index: {}]
  %s6 = inlined_call_operand.vmem [shape: f32[2,64,32], index: 6, kind: input, shape index: {}]
  %s7 = inlined_call_operand.hbm [shape: f32[2,8,96], index: 7, kind: input, shape index: {}]
  %s8 = inlined_call_operand.vmem [shape: f32[2,40,128], index: 8, kind: input, shape index: {}]
  %s9 = inlined_call_operand.hbm [shape: f32[2,128], index: 9, kind: output, shape index: {}]
  %s10 = sld [smem:[#allocation0]]
  $region50: #{spam_classifier_forward.1} parent=0
    _
  %s12 = ssub.s32 1, %s10
  %s13 = scalar_select 0, %s12, %s10
  $region1: #{spam_classifier_forward.1} parent=0
    #allocation2 [shape = 'u8[8192]{0}', space=vmem, size = 0x2000, scoped, tag = 'input window, operand 7, single buffered']
    #allocation3 [shape = 's32[1]{0}', space=sflag, size = 0x4, scoped, tag = 'scoped memory for spam_classifier_forward.1']
    #allocation4 [shape = 's32[1]{0}', space=sflag, size = 0x4, scoped, tag = 'scoped memory for spam_classifier_forward.1']
    #allocation5 [shape = 'u8[1024]{0}', space=vmem, size = 0x400, scoped, tag = 'output window, operand 0, single buffered']
    %14 = vsyncpa [#allocation3], 0
    %15 = vsyncpa [#allocation4], 0
    // Predicated region
    $region2: #{spam_classifier_forward.1} parent=1 // pred_check
      _
    $region3: #{spam_classifier_forward.1} parent=1 // pred_check_branch
      %17 = sbr.rel (0) target = $region5
    $region4: #{spam_classifier_forward.1} parent=1 // pred_region
      _
    $region5: #{spam_classifier_forward.1} parent=1 // pred_fallthru
      _
    // Predicated region
    $region6: #{spam_classifier_forward.1} parent=1 // pred_check
      _
    $region7: #{spam_classifier_forward.1} parent=1 // pred_check_branch
      %19 = sbr.rel (0) target = $region9
    $region8: #{spam_classifier_forward.1} parent=1 // pred_region
      _
    $region9: #{spam_classifier_forward.1} parent=1 // pred_fallthru
      _
    // Predicated region
    $region10: #{spam_classifier_forward.1} parent=1 // pred_check
      _
    $region11: #{spam_classifier_forward.1} parent=1 // pred_check_branch
      %21 = sbr.rel (0) target = $region13
    $region12: #{spam_classifier_forward.1} parent=1 // pred_region
      _
    $region13: #{spam_classifier_forward.1} parent=1 // pred_fallthru
      _
    // Predicated region
    $region14: #{spam_classifier_forward.1} parent=1 // pred_check
      _
    $region15: #{spam_classifier_forward.1} parent=1 // pred_check_branch
      %23 = sbr.rel (0) target = $region17
    $region16: #{spam_classifier_forward.1} parent=1 // pred_region
      _
    $region17: #{spam_classifier_forward.1} parent=1 // pred_fallthru
      _
    // Predicated region
    $region18: #{spam_classifier_forward.1} parent=1 // pred_check
      _
    $region19: #{spam_classifier_forward.1} parent=1 // pred_check_branch
      %25 = sbr.rel (0) target = $region21
    $region20: #{spam_classifier_forward.1} parent=1 // pred_region
      _
    $region21: #{spam_classifier_forward.1} parent=1 // pred_fallthru
      _
    // Predicated region
    $region22: #{spam_classifier_forward.1} parent=1 // pred_check
      _
    $region23: #{spam_classifier_forward.1} parent=1 // pred_check_branch
      %27 = sbr.rel (0) target = $region25
    $region24: #{spam_classifier_forward.1} parent=1 // pred_region
      _
    $region25: #{spam_classifier_forward.1} parent=1 // pred_fallthru
      _
    // Predicated region
    $region26: #{spam_classifier_forward.1} parent=1 // pred_check
      _
    $region27: #{spam_classifier_forward.1} parent=1 // pred_check_branch
      %29 = sbr.rel (0) target = $region29
    $region28: #{spam_classifier_forward.1} parent=1 // pred_region
      _
    $region29: #{spam_classifier_forward.1} parent=1 // pred_fallthru
      _
    // Predicated region
    $region30: #{spam_classifier_forward.1} parent=1 // pred_check
      _
    $region31: #{spam_classifier_forward.1} parent=1 // pred_check_branch
      %31 = sbr.rel (0) target = $region33
    $region32: #{spam_classifier_forward.1} parent=1 // pred_region
      %s33 = ssub.s32 256, 256
      %34 = vsyncadd [#allocation3], %s33
      %s35 = sshll.u32 [#allocation2], 4
      %s36 = int_to_ptr.vmem [resolvable:$true] %s35
      %41 = dma.hbm_to_vmem [thread:$0]  %s7, 256, %s36, [#allocation3], 128, 128, 8
    $region33: #{spam_classifier_forward.1} parent=1 // pred_fallthru
      _
    // Predicated region
    $region34: #{spam_classifier_forward.1} parent=1 // pred_check
      _
    $region35: #{spam_classifier_forward.1} parent=1 // pred_check_branch
      %43 = sbr.rel (0) target = $region37
    $region36: #{spam_classifier_forward.1} parent=1 // pred_region
      _
    $region37: #{spam_classifier_forward.1} parent=1 // pred_fallthru
      _
    // Predicated region
    $region38: #{spam_classifier_forward.1} parent=1 // pred_check
      _
    $region39: #{spam_classifier_forward.1} parent=1 // pred_check_branch
      %45 = sbr.rel (0) target = $region41
    $region40: #{spam_classifier_forward.1} parent=1 // pred_region
      %46 = dma.done [#allocation3], 256
    $region41: #{spam_classifier_forward.1} parent=1 // pred_fallthru
      _
    %v47 = vld [vmem:[%s0] sm:$0xff]
    %v48 = vld [vmem:[%s0 + $0x8] sm:$0xff]
    %v49 = vld [vmem:[%s1] sm:$0x3]
    %v50 = vld [vmem:[%s2] sm:$0xff]
    %v51 = vld [vmem:[%s2 + $0x8] sm:$0xff]
    %v52 = vld [vmem:[%s2 + $0x10] sm:$0xff]
    %v53 = vld [vmem:[%s2 + $0x18] sm:$0xff]
    %v54 = vld [vmem:[%s2 + $0x20] sm:$0xff]
    %v55 = vld [vmem:[%s2 + $0x28] sm:$0xff]
    %v56 = vld [vmem:[%s2 + $0x30] sm:$0xff]
    %v57 = vld [vmem:[%s2 + $0x38] sm:$0xff]
    %v58 = vld [vmem:[%s2 + $0x40] sm:$0xff]
    %v59 = vld [vmem:[%s2 + $0x48] sm:$0xff]
    %v60 = vld [vmem:[%s2 + $0x50] sm:$0x3]
    %v61 = vlaneseq
    %v62 = vand.u32 %v61, 127
    %63 = vset.pattern.permute.xlu0 0
    %64 = vperm.xlu0 %63, %v47
    %v65 = vpop.permute.xlu0 %64
    %66 = vset.pattern.permute.xlu0 0
    %67 = vperm.xlu0 %66, %v48
    %v68 = vpop.permute.xlu0 %67
    %vm69 = vcmp.eq.s32.totalorder %v62, %v65
    %vm70 = vcmp.eq.s32.totalorder %v62, %v68
    %71 = vset.pattern.permute.xlu0 1
    %72 = vperm.xlu0 %71, %v47
    %v73 = vpop.permute.xlu0 %72
    %74 = vset.pattern.permute.xlu0 1
    %75 = vperm.xlu0 %74, %v48
    %v76 = vpop.permute.xlu0 %75
    %vm77 = vcmp.eq.s32.totalorder %v62, %v73
    %vm78 = vcmp.eq.s32.totalorder %v62, %v76
    %vm79 = vmor %vm69, %vm77
    %vm80 = vmor %vm70, %vm78
    %v81 = vsel %vm79, 1, 0
    %v82 = vsel %vm80, 1, 0
    %v83 = vcvt.s32.f32 %v81
    %v84 = vcvt.s32.f32 %v82
    %vm85 = vcmask 654336
    %v87 = vsel %vm85, %v83, 0
    %v90 = vsel %vm85, %v84, 0
    %92 = vmatprep.subr.mxu0 0.0
    %93 = vmatpush1.msra.mxu0 %v50
    %94 = vmatprep.subr.mxu0 0.0
    %95 = vmatpush1.msra.mxu0 %v51
    %96 = vmatprep.subr.mxu0 0.0
    %97 = vmatpush1.msra.mxu0 %v52
    %98 = vmatprep.subr.mxu0 0.0
    %99 = vmatpush1.msra.mxu0 %v53
    %100 = vmatprep.subr.mxu0 0.0
    %101 = vmatpush1.msra.mxu0 %v54
    %102 = vmatprep.subr.mxu0 0.0
    %103 = vmatpush1.msra.mxu0 %v55
    %104 = vmatprep.subr.mxu0 0.0
    %105 = vmatpush1.msra.mxu0 %v56
    %106 = vmatprep.subr.mxu0 0.0
    %107 = vmatpush1.msra.mxu0 %v57
    %108 = vmatprep.subr.mxu0 0.0
    %109 = vmatpush1.msra.mxu0 %v58
    %110 = vmatprep.subr.mxu0 0.0
    %111 = vmatpush1.msra.mxu0 %v59
    %112 = vmatprep.subr.mxu0 0.0
    %113 = vmatpush1.msra.mxu0 0.0
    %114 = vmatprep.subr.mxu0 0.0
    %115 = vmatpush1.msra.mxu0 0.0
    %116 = vmatprep.subr.mxu0 0.0
    %117 = vmatpush1.msra.mxu0 0.0
    %118 = vmatprep.subr.mxu0 0.0
    %119 = vmatpush1.msra.mxu0 0.0
    %120 = vmatprep.subr.mxu0 0.0
    %121 = vmatpush1.msra.mxu0 0.0
    %122 = vmatprep.subr.mxu0 0.0
    %123 = vmatpush1.msra.mxu0 0.0
    %124 = vmatprep.subr.mxu0 0.0
    %125 = vmatpush1.msra.mxu0 0.0
    %126 = vmatprep.subr.mxu0 0.0
    %127 = vmatpush1.msra.mxu0 0.0
    %128 = vmatprep.subr.mxu0 0.0
    %129 = vmatpush1.msra.mxu0 0.0
    %130 = vmatprep.subr.mxu0 0.0
    %131 = vmatpush1.msra.mxu0 0.0
    %132 = vmatprep.subr.mxu0 0.0
    %133 = vmatpush1.msra.mxu0 0.0
    %134 = vmatprep.subr.mxu0 0.0
    %135 = vmatpush1.msra.mxu0 0.0
    %136 = vmatprep.subr.mxu0 0.0
    %137 = vmatpush1.msra.mxu0 0.0
    %138 = vmatprep.subr.mxu0 0.0
    %139 = vmatpush1.msra.mxu0 0.0
    %140 = vmatprep.subr.mxu0 0.0
    %141 = vmatpush1.msra.mxu0 0.0
    %142 = vmatprep.subr.mxu0 0.0
    %143 = vmatpush1.msra.mxu0 0.0
    %144 = vmatprep.subr.mxu0 0.0
    %145 = vmatpush1.msra.mxu0 0.0
    %146 = vmatprep.subr.mxu0 0.0
    %147 = vmatpush1.msra.mxu0 0.0
    %148 = vmatprep.subr.mxu0 0.0
    %149 = vmatpush1.msra.mxu0 0.0
    %150 = vmatprep.subr.mxu0 0.0
    %151 = vmatpush1.msra.mxu0 0.0
    %152 = vmatprep.subr.mxu0 0.0
    %153 = vmatpush1.msra.mxu0 0.0
    %154 = vmatprep.subr.mxu0 0.0
    %155 = vmatpush1.msra.mxu0 0.0
    %156 = vmatprep.mubr.f32.mxu0 0.0
    %157 = vmatmul.mubr.f32.gmra.mrb[0].mxu0 %v87
    %v158 = vpop.f32.mrb[0].mxu0
    %v159 = vadd.f32 0.0, %v158
    %v160 = vpop.f32.mrb[0].mxu0
    %161 = vmatprep.mubr.f32.mxu0 0.0
    %162 = vmatmul.mubr.f32.gmra.mrb[0].mxu0 %v90
    %v163 = vpop.f32.mrb[0].mxu0
    %v164 = vadd.f32 0.0, %v163
    %v165 = vpop.f32.mrb[0].mxu0
    %166 = vdwg.mxu0
    %vm167 = vcmask 261120
    %v168 = vsel %vm167, %v159, 0.0
    %169 = vadd.xlane.f32.xlu0 %v168
    %v170 = vpop.xlane.xlu0 %169
    %v171 = vsel %vm167, %v164, 0.0
    %172 = vadd.xlane.f32.xlu0 %v171
    %v173 = vpop.xlane.xlu0 %172
    %v174 = vrcp.pop 32.0
    %v175 = vmul.f32 %v170, %v174
    %v176 = vmul.f32 %v173, %v174
    %v177 = vsub.f32 %v159, %v175
    %v178 = vsub.f32 %v164, %v176
    %v179 = vmul.f32 %v177, %v177
    %v180 = vmul.f32 %v178, %v178
    %v181 = vsel %vm167, %v179, 0.0
    %182 = vadd.xlane.f32.xlu0 %v181
    %v183 = vpop.xlane.xlu0 %182
    %v184 = vsel %vm167, %v180, 0.0
    %185 = vadd.xlane.f32.xlu0 %v184
    %v186 = vpop.xlane.xlu0 %185
    %v187 = vmul.f32 %v183, %v174
    %v188 = vmul.f32 %v186, %v174
    %v189 = vadd.f32 %v187, 1e-12
    %v190 = vadd.f32 %v188, 1e-12
    %v191 = vrsqrt.pop %v189
    %v192 = vrsqrt.pop %v190
    %v193 = vmul.f32 %v177, %v191
    %v194 = vmul.f32 %v178, %v192
    %v195 = vlaneseq
    %v196 = vshrl.u32 %v195, 7
    %v197 = vsub.s32 0, %v196
    %v198 = vrot.slane %v60, %v197
    %v199 = vmul.f32 %v193, %v198
    %v200 = vmul.f32 %v194, %v198
    %v201 = vlaneseq
    %v202 = vshrl.u32 %v201, 7
    %v203 = vsub.s32 1, %v202
    %v204 = vrot.slane %v60, %v203
    %v205 = vadd.f32 %v199, %v204
    %v206 = vadd.f32 %v200, %v204
    %207 = vset.pattern.permute.xlu0 2
    %208 = vperm.xlu0 %207, %v47
    %v209 = vpop.permute.xlu0 %208
    %210 = vset.pattern.permute.xlu0 2
    %211 = vperm.xlu0 %210, %v48
    %v212 = vpop.permute.xlu0 %211
    %v213 = vlaneseq
    %v214 = vshrl.u32 %v213, 7
    %v215 = vsub.s32 1, %v214
    %v216 = vrot.slane %v49, %v215
    %vm217 = vcmp.eq.s32.totalorder %v209, %v216
    %vm218 = vcmp.eq.s32.totalorder %v212, %v216
    %vm219 = vcmp.gt.s32.totalorder %v49, 0
    %v220 = vsel %vm219, 1, 0
    %v221 = vlaneseq
    %v222 = vshrl.u32 %v221, 7
    %v223 = vsub.s32 0, %v222
    %v224 = vrot.slane %v220, %v223
    %vm225 = vcmp.eq.s32.totalorder %v224, 1
    %vm226 = vmand %vm217, %vm225
    %vm227 = vmand %vm218, %vm225
    %v228 = vsel %vm226, 0.0, -1e+09
    %v229 = vsel %vm227, 0.0, -1e+09
    %v230 = vld [vmem:[#allocation2] sm:$0xff]
    %v231 = vld [vmem:[%s3] sm:$0xff]
    %v232 = vld [vmem:[%s3 + $0x8] sm:$0xff]
    %v233 = vld [vmem:[%s3 + $0x10] sm:$0xff]
    %v234 = vld [vmem:[%s3 + $0x18] sm:$0xff]
    %v235 = vlaneseq
    %v236 = vshrl.u32 %v235, 7
    %v237 = vsub.s32 0, %v236
    %v238 = vrot.slane %v230, %v237
    %v240 = vsel %vm167, %v205, 0
    %v243 = vsel %vm167, %v206, 0
    %245 = vmatprep.subr.mxu0 0.0
    %246 = vmatpush1.msra.mxu0 %v231
    %247 = vmatprep.subr.mxu0 0.0
    %248 = vmatpush1.msra.mxu0 %v232
    %249 = vmatprep.subr.mxu0 0.0
    %250 = vmatpush1.msra.mxu0 %v233
    %251 = vmatprep.subr.mxu0 0.0
    %252 = vmatpush1.msra.mxu0 %v234
    %253 = vmatprep.subr.mxu0 0.0
    %254 = vmatpush1.msra.mxu0 0.0
    %255 = vmatprep.subr.mxu0 0.0
    %256 = vmatpush1.msra.mxu0 0.0
    %257 = vmatprep.subr.mxu0 0.0
    %258 = vmatpush1.msra.mxu0 0.0
    %259 = vmatprep.subr.mxu0 0.0
    %260 = vmatpush1.msra.mxu0 0.0
    %261 = vmatprep.subr.mxu0 0.0
    %262 = vmatpush1.msra.mxu0 0.0
    %263 = vmatprep.subr.mxu0 0.0
    %264 = vmatpush1.msra.mxu0 0.0
    %265 = vmatprep.subr.mxu0 0.0
    %266 = vmatpush1.msra.mxu0 0.0
    %267 = vmatprep.subr.mxu0 0.0
    %268 = vmatpush1.msra.mxu0 0.0
    %269 = vmatprep.subr.mxu0 0.0
    %270 = vmatpush1.msra.mxu0 0.0
    %271 = vmatprep.subr.mxu0 0.0
    %272 = vmatpush1.msra.mxu0 0.0
    %273 = vmatprep.subr.mxu0 0.0
    %274 = vmatpush1.msra.mxu0 0.0
    %275 = vmatprep.subr.mxu0 0.0
    %276 = vmatpush1.msra.mxu0 0.0
    %277 = vmatprep.subr.mxu0 0.0
    %278 = vmatpush1.msra.mxu0 0.0
    %279 = vmatprep.subr.mxu0 0.0
    %280 = vmatpush1.msra.mxu0 0.0
    %281 = vmatprep.subr.mxu0 0.0
    %282 = vmatpush1.msra.mxu0 0.0
    %283 = vmatprep.subr.mxu0 0.0
    %284 = vmatpush1.msra.mxu0 0.0
    %285 = vmatprep.subr.mxu0 0.0
    %286 = vmatpush1.msra.mxu0 0.0
    %287 = vmatprep.subr.mxu0 0.0
    %288 = vmatpush1.msra.mxu0 0.0
    %289 = vmatprep.subr.mxu0 0.0
    %290 = vmatpush1.msra.mxu0 0.0
    %291 = vmatprep.subr.mxu0 0.0
    %292 = vmatpush1.msra.mxu0 0.0
    %293 = vmatprep.subr.mxu0 0.0
    %294 = vmatpush1.msra.mxu0 0.0
    %295 = vmatprep.subr.mxu0 0.0
    %296 = vmatpush1.msra.mxu0 0.0
    %297 = vmatprep.subr.mxu0 0.0
    %298 = vmatpush1.msra.mxu0 0.0
    %299 = vmatprep.subr.mxu0 0.0
    %300 = vmatpush1.msra.mxu0 0.0
    %301 = vmatprep.subr.mxu0 0.0
    %302 = vmatpush1.msra.mxu0 0.0
    %303 = vmatprep.subr.mxu0 0.0
    %304 = vmatpush1.msra.mxu0 0.0
    %305 = vmatprep.subr.mxu0 0.0
    %306 = vmatpush1.msra.mxu0 0.0
    %307 = vmatprep.subr.mxu0 0.0
    %308 = vmatpush1.msra.mxu0 0.0
    %309 = vmatprep.mubr.f32.mxu0 0.0
    %310 = vmatmul.mubr.f32.gmra.mrb[0].mxu0 %v240
    %v311 = vpop.f32.mrb[0].mxu0
    %v312 = vadd.f32 %v238, %v311
    %v313 = vpop.f32.mrb[0].mxu0
    %314 = vmatprep.mubr.f32.mxu0 0.0
    %315 = vmatmul.mubr.f32.gmra.mrb[0].mxu0 %v243
    %v316 = vpop.f32.mrb[0].mxu0
    %v317 = vadd.f32 %v238, %v316
    %v318 = vpop.f32.mrb[0].mxu0
    %319 = vdwg.mxu0
    %322 = vrot.lane.b32.xlu0 %v312, 112
    %v323 = vpop.permute.xlu0 %322
    %324 = vrot.lane.b32.xlu0 %v317, 112
    %v325 = vpop.permute.xlu0 %324
    %326 = vrot.lane.b32.xlu0 %v312, 96
    %v327 = vpop.permute.xlu0 %326
    %328 = vrot.lane.b32.xlu0 %v317, 96
    %v329 = vpop.permute.xlu0 %328
    %vm330 = vcmask 130048
    %v331 = vsel %vm330, %v312, 0
    %v333 = vsel %vm330, %v317, 0
    %v335 = vsel %vm330, %v327, 0
    %v337 = vsel %vm330, %v329, 0
    %339 = vmatprep.subr.mxu0 0.0
    %340 = vmatpush1.xpose.msra.mxu0 %v335
    %341 = vmatprep.subr.mxu0 0.0
    %342 = vmatpush1.xpose.msra.mxu0 %v337
    %343 = vmatprep.subr.mxu0 0.0
    %344 = vmatpush1.xpose.msra.mxu0 0.0
    %345 = vmatprep.subr.mxu0 0.0
    %346 = vmatpush1.xpose.msra.mxu0 0.0
    %347 = vmatprep.subr.mxu0 0.0
    %348 = vmatpush1.xpose.msra.mxu0 0.0
    %349 = vmatprep.subr.mxu0 0.0
    %350 = vmatpush1.xpose.msra.mxu0 0.0
    %351 = vmatprep.subr.mxu0 0.0
    %352 = vmatpush1.xpose.msra.mxu0 0.0
    %353 = vmatprep.subr.mxu0 0.0
    %354 = vmatpush1.xpose.msra.mxu0 0.0
    %355 = vmatprep.subr.mxu0 0.0
    %356 = vmatpush1.xpose.msra.mxu0 0.0
    %357 = vmatprep.subr.mxu0 0.0
    %358 = vmatpush1.xpose.msra.mxu0 0.0
    %359 = vmatprep.subr.mxu0 0.0
    %360 = vmatpush1.xpose.msra.mxu0 0.0
    %361 = vmatprep.subr.mxu0 0.0
    %362 = vmatpush1.xpose.msra.mxu0 0.0
    %363 = vmatprep.subr.mxu0 0.0
    %364 = vmatpush1.xpose.msra.mxu0 0.0
    %365 = vmatprep.subr.mxu0 0.0
    %366 = vmatpush1.xpose.msra.mxu0 0.0
    %367 = vmatprep.subr.mxu0 0.0
    %368 = vmatpush1.xpose.msra.mxu0 0.0
    %369 = vmatprep.subr.mxu0 0.0
    %370 = vmatpush1.xpose.msra.mxu0 0.0
    %371 = vmatprep.subr.mxu0 0.0
    %372 = vmatpush1.xpose.msra.mxu0 0.0
    %373 = vmatprep.subr.mxu0 0.0
    %374 = vmatpush1.xpose.msra.mxu0 0.0
    %375 = vmatprep.subr.mxu0 0.0
    %376 = vmatpush1.xpose.msra.mxu0 0.0
    %377 = vmatprep.subr.mxu0 0.0
    %378 = vmatpush1.xpose.msra.mxu0 0.0
    %379 = vmatprep.subr.mxu0 0.0
    %380 = vmatpush1.xpose.msra.mxu0 0.0
    %381 = vmatprep.subr.mxu0 0.0
    %382 = vmatpush1.xpose.msra.mxu0 0.0
    %383 = vmatprep.subr.mxu0 0.0
    %384 = vmatpush1.xpose.msra.mxu0 0.0
    %385 = vmatprep.subr.mxu0 0.0
    %386 = vmatpush1.xpose.msra.mxu0 0.0
    %387 = vmatprep.subr.mxu0 0.0
    %388 = vmatpush1.xpose.msra.mxu0 0.0
    %389 = vmatprep.subr.mxu0 0.0
    %390 = vmatpush1.xpose.msra.mxu0 0.0
    %391 = vmatprep.subr.mxu0 0.0
    %392 = vmatpush1.xpose.msra.mxu0 0.0
    %393 = vmatprep.subr.mxu0 0.0
    %394 = vmatpush1.xpose.msra.mxu0 0.0
    %395 = vmatprep.subr.mxu0 0.0
    %396 = vmatpush1.xpose.msra.mxu0 0.0
    %397 = vmatprep.subr.mxu0 0.0
    %398 = vmatpush1.xpose.msra.mxu0 0.0
    %399 = vmatprep.subr.mxu0 0.0
    %400 = vmatpush1.xpose.msra.mxu0 0.0
    %401 = vmatprep.subr.mxu0 0.0
    %402 = vmatpush1.xpose.msra.mxu0 0.0
    %403 = vmatprep.mubr.f32.mxu0 0.0
    %404 = vmatmul.mubr.f32.gmra.mrb[0].mxu0 %v331
    %v405 = vpop.f32.mrb[0].mxu0
    %v406 = vadd.f32 0.0, %v405
    %v407 = vpop.f32.mrb[0].mxu0
    %408 = vmatprep.mubr.f32.mxu0 0.0
    %409 = vmatmul.mubr.f32.gmra.mrb[0].mxu0 %v333
    %v410 = vpop.f32.mrb[0].mxu0
    %v411 = vadd.f32 0.0, %v410
    %v412 = vpop.f32.mrb[0].mxu0
    %413 = vdwg.mxu0
    %414 = vrot.lane.b32.xlu0 %v323, 96
    %v415 = vpop.permute.xlu0 %414
    %416 = vrot.lane.b32.xlu0 %v325, 96
    %v417 = vpop.permute.xlu0 %416
    %v418 = vsel %vm330, %v323, 0
    %v420 = vsel %vm330, %v325, 0
    %v422 = vsel %vm330, %v415, 0
    %v424 = vsel %vm330, %v417, 0
    %426 = vmatprep.subr.mxu0 0.0
    %427 = vmatpush1.xpose.msra.mxu0 %v422
    %428 = vmatprep.subr.mxu0 0.0
    %429 = vmatpush1.xpose.msra.mxu0 %v424
    %430 = vmatprep.subr.mxu0 0.0
    %431 = vmatpush1.xpose.msra.mxu0 0.0
    %432 = vmatprep.subr.mxu0 0.0
    %433 = vmatpush1.xpose.msra.mxu0 0.0
    %434 = vmatprep.subr.mxu0 0.0
    %435 = vmatpush1.xpose.msra.mxu0 0.0
    %436 = vmatprep.subr.mxu0 0.0
    %437 = vmatpush1.xpose.msra.mxu0 0.0
    %438 = vmatprep.subr.mxu0 0.0
    %439 = vmatpush1.xpose.msra.mxu0 0.0
    %440 = vmatprep.subr.mxu0 0.0
    %441 = vmatpush1.xpose.msra.mxu0 0.0
    %442 = vmatprep.subr.mxu0 0.0
    %443 = vmatpush1.xpose.msra.mxu0 0.0
    %444 = vmatprep.subr.mxu0 0.0
    %445 = vmatpush1.xpose.msra.mxu0 0.0
    %446 = vmatprep.subr.mxu0 0.0
    %447 = vmatpush1.xpose.msra.mxu0 0.0
    %448 = vmatprep.subr.mxu0 0.0
    %449 = vmatpush1.xpose.msra.mxu0 0.0
    %450 = vmatprep.subr.mxu0 0.0
    %451 = vmatpush1.xpose.msra.mxu0 0.0
    %452 = vmatprep.subr.mxu0 0.0
    %453 = vmatpush1.xpose.msra.mxu0 0.0
    %454 = vmatprep.subr.mxu0 0.0
    %455 = vmatpush1.xpose.msra.mxu0 0.0
    %456 = vmatprep.subr.mxu0 0.0
    %457 = vmatpush1.xpose.msra.mxu0 0.0
    %458 = vmatprep.subr.mxu0 0.0
    %459 = vmatpush1.xpose.msra.mxu0 0.0
    %460 = vmatprep.subr.mxu0 0.0
    %461 = vmatpush1.xpose.msra.mxu0 0.0
    %462 = vmatprep.subr.mxu0 0.0
    %463 = vmatpush1.xpose.msra.mxu0 0.0
    %464 = vmatprep.subr.mxu0 0.0
    %465 = vmatpush1.xpose.msra.mxu0 0.0
    %466 = vmatprep.subr.mxu0 0.0
    %467 = vmatpush1.xpose.msra.mxu0 0.0
    %468 = vmatprep.subr.mxu0 0.0
    %469 = vmatpush1.xpose.msra.mxu0 0.0
    %470 = vmatprep.subr.mxu0 0.0
    %471 = vmatpush1.xpose.msra.mxu0 0.0
    %472 = vmatprep.subr.mxu0 0.0
    %473 = vmatpush1.xpose.msra.mxu0 0.0
    %474 = vmatprep.subr.mxu0 0.0
    %475 = vmatpush1.xpose.msra.mxu0 0.0
    %476 = vmatprep.subr.mxu0 0.0
    %477 = vmatpush1.xpose.msra.mxu0 0.0
    %478 = vmatprep.subr.mxu0 0.0
    %479 = vmatpush1.xpose.msra.mxu0 0.0
    %480 = vmatprep.subr.mxu0 0.0
    %481 = vmatpush1.xpose.msra.mxu0 0.0
    %482 = vmatprep.subr.mxu0 0.0
    %483 = vmatpush1.xpose.msra.mxu0 0.0
    %484 = vmatprep.subr.mxu0 0.0
    %485 = vmatpush1.xpose.msra.mxu0 0.0
    %486 = vmatprep.subr.mxu0 0.0
    %487 = vmatpush1.xpose.msra.mxu0 0.0
    %488 = vmatprep.subr.mxu0 0.0
    %489 = vmatpush1.xpose.msra.mxu0 0.0
    %490 = vmatprep.mubr.f32.mxu0 0.0
    %491 = vmatmul.mubr.f32.gmra.mrb[0].mxu0 %v418
    %v492 = vpop.f32.mrb[0].mxu0
    %v493 = vadd.f32 0.0, %v492
    %v494 = vpop.f32.mrb[0].mxu0
    %495 = vmatprep.mubr.f32.mxu0 0.0
    %496 = vmatmul.mubr.f32.gmra.mrb[0].mxu0 %v420
    %v497 = vpop.f32.mrb[0].mxu0
    %v498 = vadd.f32 0.0, %v497
    %v499 = vpop.f32.mrb[0].mxu0
    %500 = vdwg.mxu0
    %v501 = vmul.f32 %v406, 0.25
    %v502 = vmul.f32 %v411, 0.25
    %v503 = vmul.f32 %v493, 0.25
    %v504 = vmul.f32 %v498, 0.25
    %v505 = vadd.f32 %v501, %v228
    %v506 = vadd.f32 %v502, %v229
    %v507 = vadd.f32 %v503, %v228
    %v508 = vadd.f32 %v504, %v229
    %v509 = vsel %vm330, %v505, -inf
    %510 = vmax.xlane.f32.xlu0 %v509
    %v511 = vpop.xlane.xlu0 %510
    %v512 = vsel %vm330, %v506, -inf
    %513 = vmax.xlane.f32.xlu0 %v512
    %v514 = vpop.xlane.xlu0 %513
    %v515 = vsel %vm330, %v507, -inf
    %516 = vmax.xlane.f32.xlu0 %v515
    %v517 = vpop.xlane.xlu0 %516
    %v518 = vsel %vm330, %v508, -inf
    %519 = vmax.xlane.f32.xlu0 %v518
    %v520 = vpop.xlane.xlu0 %519
    %v521 = vsub.f32 %v505, %v511
    %v522 = vsub.f32 %v506, %v514
    %v523 = vsub.f32 %v507, %v517
    %v524 = vsub.f32 %v508, %v520
    %v525 = vmul.f32 %v521, 1.442695
    %v526 = vpow.pop %v525
    %v527 = vmul.f32 %v522, 1.442695
    %v528 = vpow.pop %v527
    %v529 = vmul.f32 %v523, 1.442695
    %v530 = vpow.pop %v529
    %v531 = vmul.f32 %v524, 1.442695
    %v532 = vpow.pop %v531
    %v533 = vsel %vm330, %v526, 0.0
    %534 = vadd.xlane.f32.xlu0 %v533
    %v535 = vpop.xlane.xlu0 %534
    %v536 = vsel %vm330, %v528, 0.0
    %537 = vadd.xlane.f32.xlu0 %v536
    %v538 = vpop.xlane.xlu0 %537
    %v539 = vsel %vm330, %v530, 0.0
    %540 = vadd.xlane.f32.xlu0 %v539
    %v541 = vpop.xlane.xlu0 %540
    %v542 = vsel %vm330, %v532, 0.0
    %543 = vadd.xlane.f32.xlu0 %v542
    %v544 = vpop.xlane.xlu0 %543
    %v545 = vrcp.pop %v535
    %v546 = vrcp.pop %v538
    %v547 = vrcp.pop %v541
    %v548 = vrcp.pop %v544
    %v549 = vmul.f32 %v526, %v545
    %v550 = vmul.f32 %v528, %v546
    %v551 = vmul.f32 %v530, %v547
    %v552 = vmul.f32 %v532, %v548
    %553 = vrot.lane.b32.xlu0 %v312, 64
    %v554 = vpop.permute.xlu0 %553
    %555 = vrot.lane.b32.xlu0 %v317, 64
    %v556 = vpop.permute.xlu0 %555
    %v560 = vsel %vm330, %v549, 0
    %v563 = vsel %vm330, %v550, 0
    %565 = vmatprep.subr.mxu0 0.0
    %566 = vmatpush1.msra.mxu0 %v554
    %567 = vmatprep.subr.mxu0 0.0
    %568 = vmatpush1.msra.mxu0 %v556
    %569 = vmatprep.subr.mxu0 0.0
    %570 = vmatpush1.msra.mxu0 0.0
    %571 = vmatprep.subr.mxu0 0.0
    %572 = vmatpush1.msra.mxu0 0.0
    %573 = vmatprep.subr.mxu0 0.0
    %574 = vmatpush1.msra.mxu0 0.0
    %575 = vmatprep.subr.mxu0 0.0
    %576 = vmatpush1.msra.mxu0 0.0
    %577 = vmatprep.subr.mxu0 0.0
    %578 = vmatpush1.msra.mxu0 0.0
    %579 = vmatprep.subr.mxu0 0.0
    %580 = vmatpush1.msra.mxu0 0.0
    %581 = vmatprep.subr.mxu0 0.0
    %582 = vmatpush1.msra.mxu0 0.0
    %583 = vmatprep.subr.mxu0 0.0
    %584 = vmatpush1.msra.mxu0 0.0
    %585 = vmatprep.subr.mxu0 0.0
    %586 = vmatpush1.msra.mxu0 0.0
    %587 = vmatprep.subr.mxu0 0.0
    %588 = vmatpush1.msra.mxu0 0.0
    %589 = vmatprep.subr.mxu0 0.0
    %590 = vmatpush1.msra.mxu0 0.0
    %591 = vmatprep.subr.mxu0 0.0
    %592 = vmatpush1.msra.mxu0 0.0
    %593 = vmatprep.subr.mxu0 0.0
    %594 = vmatpush1.msra.mxu0 0.0
    %595 = vmatprep.subr.mxu0 0.0
    %596 = vmatpush1.msra.mxu0 0.0
    %597 = vmatprep.subr.mxu0 0.0
    %598 = vmatpush1.msra.mxu0 0.0
    %599 = vmatprep.subr.mxu0 0.0
    %600 = vmatpush1.msra.mxu0 0.0
    %601 = vmatprep.subr.mxu0 0.0
    %602 = vmatpush1.msra.mxu0 0.0
    %603 = vmatprep.subr.mxu0 0.0
    %604 = vmatpush1.msra.mxu0 0.0
    %605 = vmatprep.subr.mxu0 0.0
    %606 = vmatpush1.msra.mxu0 0.0
    %607 = vmatprep.subr.mxu0 0.0
    %608 = vmatpush1.msra.mxu0 0.0
    %609 = vmatprep.subr.mxu0 0.0
    %610 = vmatpush1.msra.mxu0 0.0
    %611 = vmatprep.subr.mxu0 0.0
    %612 = vmatpush1.msra.mxu0 0.0
    %613 = vmatprep.subr.mxu0 0.0
    %614 = vmatpush1.msra.mxu0 0.0
    %615 = vmatprep.subr.mxu0 0.0
    %616 = vmatpush1.msra.mxu0 0.0
    %617 = vmatprep.subr.mxu0 0.0
    %618 = vmatpush1.msra.mxu0 0.0
    %619 = vmatprep.subr.mxu0 0.0
    %620 = vmatpush1.msra.mxu0 0.0
    %621 = vmatprep.subr.mxu0 0.0
    %622 = vmatpush1.msra.mxu0 0.0
    %623 = vmatprep.subr.mxu0 0.0
    %624 = vmatpush1.msra.mxu0 0.0
    %625 = vmatprep.subr.mxu0 0.0
    %626 = vmatpush1.msra.mxu0 0.0
    %627 = vmatprep.subr.mxu0 0.0
    %628 = vmatpush1.msra.mxu0 0.0
    %629 = vmatprep.mubr.f32.mxu0 0.0
    %630 = vmatmul.mubr.f32.gmra.mrb[0].mxu0 %v560
    %v631 = vpop.f32.mrb[0].mxu0
    %v632 = vadd.f32 0.0, %v631
    %v633 = vpop.f32.mrb[0].mxu0
    %634 = vmatprep.mubr.f32.mxu0 0.0
    %635 = vmatmul.mubr.f32.gmra.mrb[0].mxu0 %v563
    %v636 = vpop.f32.mrb[0].mxu0
    %v637 = vadd.f32 0.0, %v636
    %v638 = vpop.f32.mrb[0].mxu0
    %639 = vdwg.mxu0
    %640 = vrot.lane.b32.xlu0 %v323, 64
    %v641 = vpop.permute.xlu0 %640
    %642 = vrot.lane.b32.xlu0 %v325, 64
    %v643 = vpop.permute.xlu0 %642
    %v647 = vsel %vm330, %v551, 0
    %v650 = vsel %vm330, %v552, 0
    %652 = vmatprep.subr.mxu0 0.0
    %653 = vmatpush1.msra.mxu0 %v641
    %654 = vmatprep.subr.mxu0 0.0
    %655 = vmatpush1.msra.mxu0 %v643
    %656 = vmatprep.subr.mxu0 0.0
    %657 = vmatpush1.msra.mxu0 0.0
    %658 = vmatprep.subr.mxu0 0.0
    %659 = vmatpush1.msra.mxu0 0.0
    %660 = vmatprep.subr.mxu0 0.0
    %661 = vmatpush1.msra.mxu0 0.0
    %662 = vmatprep.subr.mxu0 0.0
    %663 = vmatpush1.msra.mxu0 0.0
    %664 = vmatprep.subr.mxu0 0.0
    %665 = vmatpush1.msra.mxu0 0.0
    %666 = vmatprep.subr.mxu0 0.0
    %667 = vmatpush1.msra.mxu0 0.0
    %668 = vmatprep.subr.mxu0 0.0
    %669 = vmatpush1.msra.mxu0 0.0
    %670 = vmatprep.subr.mxu0 0.0
    %671 = vmatpush1.msra.mxu0 0.0
    %672 = vmatprep.subr.mxu0 0.0
    %673 = vmatpush1.msra.mxu0 0.0
    %674 = vmatprep.subr.mxu0 0.0
    %675 = vmatpush1.msra.mxu0 0.0
    %676 = vmatprep.subr.mxu0 0.0
    %677 = vmatpush1.msra.mxu0 0.0
    %678 = vmatprep.subr.mxu0 0.0
    %679 = vmatpush1.msra.mxu0 0.0
    %680 = vmatprep.subr.mxu0 0.0
    %681 = vmatpush1.msra.mxu0 0.0
    %682 = vmatprep.subr.mxu0 0.0
    %683 = vmatpush1.msra.mxu0 0.0
    %684 = vmatprep.subr.mxu0 0.0
    %685 = vmatpush1.msra.mxu0 0.0
    %686 = vmatprep.subr.mxu0 0.0
    %687 = vmatpush1.msra.mxu0 0.0
    %688 = vmatprep.subr.mxu0 0.0
    %689 = vmatpush1.msra.mxu0 0.0
    %690 = vmatprep.subr.mxu0 0.0
    %691 = vmatpush1.msra.mxu0 0.0
    %692 = vmatprep.subr.mxu0 0.0
    %693 = vmatpush1.msra.mxu0 0.0
    %694 = vmatprep.subr.mxu0 0.0
    %695 = vmatpush1.msra.mxu0 0.0
    %696 = vmatprep.subr.mxu0 0.0
    %697 = vmatpush1.msra.mxu0 0.0
    %698 = vmatprep.subr.mxu0 0.0
    %699 = vmatpush1.msra.mxu0 0.0
    %700 = vmatprep.subr.mxu0 0.0
    %701 = vmatpush1.msra.mxu0 0.0
    %702 = vmatprep.subr.mxu0 0.0
    %703 = vmatpush1.msra.mxu0 0.0
    %704 = vmatprep.subr.mxu0 0.0
    %705 = vmatpush1.msra.mxu0 0.0
    %706 = vmatprep.subr.mxu0 0.0
    %707 = vmatpush1.msra.mxu0 0.0
    %708 = vmatprep.subr.mxu0 0.0
    %709 = vmatpush1.msra.mxu0 0.0
    %710 = vmatprep.subr.mxu0 0.0
    %711 = vmatpush1.msra.mxu0 0.0
    %712 = vmatprep.subr.mxu0 0.0
    %713 = vmatpush1.msra.mxu0 0.0
    %714 = vmatprep.subr.mxu0 0.0
    %715 = vmatpush1.msra.mxu0 0.0
    %716 = vmatprep.mubr.f32.mxu0 0.0
    %717 = vmatmul.mubr.f32.gmra.mrb[0].mxu0 %v647
    %v718 = vpop.f32.mrb[0].mxu0
    %v719 = vadd.f32 0.0, %v718
    %v720 = vpop.f32.mrb[0].mxu0
    %721 = vmatprep.mubr.f32.mxu0 0.0
    %722 = vmatmul.mubr.f32.gmra.mrb[0].mxu0 %v650
    %v723 = vpop.f32.mrb[0].mxu0
    %v724 = vadd.f32 0.0, %v723
    %v725 = vpop.f32.mrb[0].mxu0
    %726 = vdwg.mxu0
    %729 = vrot.lane.b32.xlu0 %v719, 16
    %v730 = vpop.permute.xlu0 %729
    %731 = vrot.lane.b32.xlu0 %v724, 16
    %v732 = vpop.permute.xlu0 %731
    %v735 = vsel %vm330, %v632, %v730
    %v736 = vsel %vm330, %v637, %v732
    %v737 = vld [vmem:[%s4] sm:$0xff]
    %v738 = vld [vmem:[%s4 + $0x8] sm:$0xff]
    %v739 = vld [vmem:[%s4 + $0x10] sm:$0xff]
    %v740 = vld [vmem:[%s4 + $0x18] sm:$0xff]
    %v741 = vlaneseq
    %v742 = vshrl.u32 %v741, 7
    %v743 = vsub.s32 1, %v742
    %v744 = vrot.slane %v230, %v743
    %v746 = vsel %vm167, %v735, 0
    %v749 = vsel %vm167, %v736, 0
    %751 = vmatprep.subr.mxu0 0.0
    %752 = vmatpush1.msra.mxu0 %v737
    %753 = vmatprep.subr.mxu0 0.0
    %754 = vmatpush1.msra.mxu0 %v738
    %755 = vmatprep.subr.mxu0 0.0
    %756 = vmatpush1.msra.mxu0 %v739
    %757 = vmatprep.subr.mxu0 0.0
    %758 = vmatpush1.msra.mxu0 %v740
    %759 = vmatprep.subr.mxu0 0.0
    %760 = vmatpush1.msra.mxu0 0.0
    %761 = vmatprep.subr.mxu0 0.0
    %762 = vmatpush1.msra.mxu0 0.0
    %763 = vmatprep.subr.mxu0 0.0
    %764 = vmatpush1.msra.mxu0 0.0
    %765 = vmatprep.subr.mxu0 0.0
    %766 = vmatpush1.msra.mxu0 0.0
    %767 = vmatprep.subr.mxu0 0.0
    %768 = vmatpush1.msra.mxu0 0.0
    %769 = vmatprep.subr.mxu0 0.0
    %770 = vmatpush1.msra.mxu0 0.0
    %771 = vmatprep.subr.mxu0 0.0
    %772 = vmatpush1.msra.mxu0 0.0
    %773 = vmatprep.subr.mxu0 0.0
    %774 = vmatpush1.msra.mxu0 0.0
    %775 = vmatprep.subr.mxu0 0.0
    %776 = vmatpush1.msra.mxu0 0.0
    %777 = vmatprep.subr.mxu0 0.0
    %778 = vmatpush1.msra.mxu0 0.0
    %779 = vmatprep.subr.mxu0 0.0
    %780 = vmatpush1.msra.mxu0 0.0
    %781 = vmatprep.subr.mxu0 0.0
    %782 = vmatpush1.msra.mxu0 0.0
    %783 = vmatprep.subr.mxu0 0.0
    %784 = vmatpush1.msra.mxu0 0.0
    %785 = vmatprep.subr.mxu0 0.0
    %786 = vmatpush1.msra.mxu0 0.0
    %787 = vmatprep.subr.mxu0 0.0
    %788 = vmatpush1.msra.mxu0 0.0
    %789 = vmatprep.subr.mxu0 0.0
    %790 = vmatpush1.msra.mxu0 0.0
    %791 = vmatprep.subr.mxu0 0.0
    %792 = vmatpush1.msra.mxu0 0.0
    %793 = vmatprep.subr.mxu0 0.0
    %794 = vmatpush1.msra.mxu0 0.0
    %795 = vmatprep.subr.mxu0 0.0
    %796 = vmatpush1.msra.mxu0 0.0
    %797 = vmatprep.subr.mxu0 0.0
    %798 = vmatpush1.msra.mxu0 0.0
    %799 = vmatprep.subr.mxu0 0.0
    %800 = vmatpush1.msra.mxu0 0.0
    %801 = vmatprep.subr.mxu0 0.0
    %802 = vmatpush1.msra.mxu0 0.0
    %803 = vmatprep.subr.mxu0 0.0
    %804 = vmatpush1.msra.mxu0 0.0
    %805 = vmatprep.subr.mxu0 0.0
    %806 = vmatpush1.msra.mxu0 0.0
    %807 = vmatprep.subr.mxu0 0.0
    %808 = vmatpush1.msra.mxu0 0.0
    %809 = vmatprep.subr.mxu0 0.0
    %810 = vmatpush1.msra.mxu0 0.0
    %811 = vmatprep.subr.mxu0 0.0
    %812 = vmatpush1.msra.mxu0 0.0
    %813 = vmatprep.subr.mxu0 0.0
    %814 = vmatpush1.msra.mxu0 0.0
    %815 = vmatprep.mubr.f32.mxu0 0.0
    %816 = vmatmul.mubr.f32.gmra.mrb[0].mxu0 %v746
    %v817 = vpop.f32.mrb[0].mxu0
    %v818 = vadd.f32 %v744, %v817
    %v819 = vpop.f32.mrb[0].mxu0
    %820 = vmatprep.mubr.f32.mxu0 0.0
    %821 = vmatmul.mubr.f32.gmra.mrb[0].mxu0 %v749
    %v822 = vpop.f32.mrb[0].mxu0
    %v823 = vadd.f32 %v744, %v822
    %v824 = vpop.f32.mrb[0].mxu0
    %825 = vdwg.mxu0
    %v826 = vadd.f32 %v205, %v818
    %v827 = vadd.f32 %v206, %v823
    %v828 = vsel %vm167, %v826, 0.0
    %829 = vadd.xlane.f32.xlu0 %v828
    %v830 = vpop.xlane.xlu0 %829
    %v831 = vsel %vm167, %v827, 0.0
    %832 = vadd.xlane.f32.xlu0 %v831
    %v833 = vpop.xlane.xlu0 %832
    %v834 = vmul.f32 %v830, %v174
    %v835 = vmul.f32 %v833, %v174
    %v836 = vsub.f32 %v826, %v834
    %v837 = vsub.f32 %v827, %v835
    %v838 = vmul.f32 %v836, %v836
    %v839 = vmul.f32 %v837, %v837
    %v840 = vsel %vm167, %v838, 0.0
    %841 = vadd.xlane.f32.xlu0 %v840
    %v842 = vpop.xlane.xlu0 %841
    %v843 = vsel %vm167, %v839, 0.0
    %844 = vadd.xlane.f32.xlu0 %v843
    %v845 = vpop.xlane.xlu0 %844
    %v846 = vmul.f32 %v842, %v174
    %v847 = vmul.f32 %v845, %v174
    %v848 = vadd.f32 %v846, 1e-12
    %v849 = vadd.f32 %v847, 1e-12
    %v850 = vrsqrt.pop %v848
    %v851 = vrsqrt.pop %v849
    %v852 = vmul.f32 %v836, %v850
    %v853 = vmul.f32 %v837, %v851
    %v854 = vlaneseq
    %v855 = vshrl.u32 %v854, 7
    %v856 = vsub.s32 4, %v855
    %v857 = vrot.slane %v230, %v856
    %v858 = vmul.f32 %v852, %v857
    %v859 = vmul.f32 %v853, %v857
    %v860 = vlaneseq
    %v861 = vshrl.u32 %v860, 7
    %v862 = vsub.s32 5, %v861
    %v863 = vrot.slane %v230, %v862
    %v864 = vadd.f32 %v858, %v863
    %v865 = vadd.f32 %v859, %v863
    %v866 = vld [vmem:[%s5] sm:$0xff]
    %v867 = vld [vmem:[%s5 + $0x8] sm:$0xff]
    %v868 = vld [vmem:[%s5 + $0x10] sm:$0xff]
    %v869 = vld [vmem:[%s5 + $0x18] sm:$0xff]
    %v870 = vlaneseq
    %v871 = vshrl.u32 %v870, 7
    %v872 = vsub.s32 2, %v871
    %v873 = vrot.slane %v230, %v872
    %v875 = vsel %vm167, %v864, 0
    %v878 = vsel %vm167, %v865, 0
    %880 = vmatprep.subr.mxu0 0.0
    %881 = vmatpush1.msra.mxu0 %v866
    %882 = vmatprep.subr.mxu0 0.0
    %883 = vmatpush1.msra.mxu0 %v867
    %884 = vmatprep.subr.mxu0 0.0
    %885 = vmatpush1.msra.mxu0 %v868
    %886 = vmatprep.subr.mxu0 0.0
    %887 = vmatpush1.msra.mxu0 %v869
    %888 = vmatprep.subr.mxu0 0.0
    %889 = vmatpush1.msra.mxu0 0.0
    %890 = vmatprep.subr.mxu0 0.0
    %891 = vmatpush1.msra.mxu0 0.0
    %892 = vmatprep.subr.mxu0 0.0
    %893 = vmatpush1.msra.mxu0 0.0
    %894 = vmatprep.subr.mxu0 0.0
    %895 = vmatpush1.msra.mxu0 0.0
    %896 = vmatprep.subr.mxu0 0.0
    %897 = vmatpush1.msra.mxu0 0.0
    %898 = vmatprep.subr.mxu0 0.0
    %899 = vmatpush1.msra.mxu0 0.0
    %900 = vmatprep.subr.mxu0 0.0
    %901 = vmatpush1.msra.mxu0 0.0
    %902 = vmatprep.subr.mxu0 0.0
    %903 = vmatpush1.msra.mxu0 0.0
    %904 = vmatprep.subr.mxu0 0.0
    %905 = vmatpush1.msra.mxu0 0.0
    %906 = vmatprep.subr.mxu0 0.0
    %907 = vmatpush1.msra.mxu0 0.0
    %908 = vmatprep.subr.mxu0 0.0
    %909 = vmatpush1.msra.mxu0 0.0
    %910 = vmatprep.subr.mxu0 0.0
    %911 = vmatpush1.msra.mxu0 0.0
    %912 = vmatprep.subr.mxu0 0.0
    %913 = vmatpush1.msra.mxu0 0.0
    %914 = vmatprep.subr.mxu0 0.0
    %915 = vmatpush1.msra.mxu0 0.0
    %916 = vmatprep.subr.mxu0 0.0
    %917 = vmatpush1.msra.mxu0 0.0
    %918 = vmatprep.subr.mxu0 0.0
    %919 = vmatpush1.msra.mxu0 0.0
    %920 = vmatprep.subr.mxu0 0.0
    %921 = vmatpush1.msra.mxu0 0.0
    %922 = vmatprep.subr.mxu0 0.0
    %923 = vmatpush1.msra.mxu0 0.0
    %924 = vmatprep.subr.mxu0 0.0
    %925 = vmatpush1.msra.mxu0 0.0
    %926 = vmatprep.subr.mxu0 0.0
    %927 = vmatpush1.msra.mxu0 0.0
    %928 = vmatprep.subr.mxu0 0.0
    %929 = vmatpush1.msra.mxu0 0.0
    %930 = vmatprep.subr.mxu0 0.0
    %931 = vmatpush1.msra.mxu0 0.0
    %932 = vmatprep.subr.mxu0 0.0
    %933 = vmatpush1.msra.mxu0 0.0
    %934 = vmatprep.subr.mxu0 0.0
    %935 = vmatpush1.msra.mxu0 0.0
    %936 = vmatprep.subr.mxu0 0.0
    %937 = vmatpush1.msra.mxu0 0.0
    %938 = vmatprep.subr.mxu0 0.0
    %939 = vmatpush1.msra.mxu0 0.0
    %940 = vmatprep.subr.mxu0 0.0
    %941 = vmatpush1.msra.mxu0 0.0
    %942 = vmatprep.subr.mxu0 0.0
    %943 = vmatpush1.msra.mxu0 0.0
    %944 = vmatprep.mubr.f32.mxu0 0.0
    %945 = vmatmul.mubr.f32.gmra.mrb[0].mxu0 %v875
    %v946 = vpop.f32.mrb[0].mxu0
    %v947 = vadd.f32 %v873, %v946
    %v948 = vpop.f32.mrb[0].mxu0
    %949 = vmatprep.mubr.f32.mxu0 0.0
    %950 = vmatmul.mubr.f32.gmra.mrb[0].mxu0 %v878
    %v951 = vpop.f32.mrb[0].mxu0
    %v952 = vadd.f32 %v873, %v951
    %v953 = vpop.f32.mrb[0].mxu0
    %954 = vdwg.mxu0
    %v955 = vmul.f32 %v947, 0.5
    %v956 = vmul.f32 %v952, 0.5
    %v957 = vmul.f32 %v947, 0.044715
    %v958 = vmul.f32 %v952, 0.044715
    %v959 = vmul.f32 %v957, %v947
    %v960 = vmul.f32 %v958, %v952
    %v961 = vmul.f32 %v959, %v947
    %v962 = vmul.f32 %v960, %v952
    %v963 = vadd.f32 %v947, %v961
    %v964 = vadd.f32 %v952, %v962
    %v965 = vmul.f32 %v963, 0.7978846
    %v966 = vmul.f32 %v964, 0.7978846
    %v967 = vtanh.pop %v965
    %v968 = vtanh.pop %v966
    %v969 = vadd.f32 %v967, 1.0
    %v970 = vadd.f32 %v968, 1.0
    %v971 = vmul.f32 %v955, %v969
    %v972 = vmul.f32 %v956, %v970
    %v973 = vld [vmem:[%s6] sm:$0xff]
    %v974 = vld [vmem:[%s6 + $0x8] sm:$0xff]
    %v975 = vld [vmem:[%s6 + $0x10] sm:$0xff]
    %v976 = vld [vmem:[%s6 + $0x18] sm:$0xff]
    %v977 = vld [vmem:[%s6 + $0x20] sm:$0xff]
    %v978 = vld [vmem:[%s6 + $0x28] sm:$0xff]
    %v979 = vld [vmem:[%s6 + $0x30] sm:$0xff]
    %v980 = vld [vmem:[%s6 + $0x38] sm:$0xff]
    %v981 = vlaneseq
    %v982 = vshrl.u32 %v981, 7
    %v983 = vsub.s32 3, %v982
    %v984 = vrot.slane %v230, %v983
    %vm985 = vcmask 523264
    %v987 = vsel %vm985, %v971, 0
    %v990 = vsel %vm985, %v972, 0
    %992 = vmatprep.subr.mxu0 0.0
    %993 = vmatpush1.msra.mxu0 %v973
    %994 = vmatprep.subr.mxu0 0.0
    %995 = vmatpush1.msra.mxu0 %v974
    %996 = vmatprep.subr.mxu0 0.0
    %997 = vmatpush1.msra.mxu0 %v975
    %998 = vmatprep.subr.mxu0 0.0
    %999 = vmatpush1.msra.mxu0 %v976
    %1000 = vmatprep.subr.mxu0 0.0
    %1001 = vmatpush1.msra.mxu0 %v977
    %1002 = vmatprep.subr.mxu0 0.0
    %1003 = vmatpush1.msra.mxu0 %v978
    %1004 = vmatprep.subr.mxu0 0.0
    %1005 = vmatpush1.msra.mxu0 %v979
    %1006 = vmatprep.subr.mxu0 0.0
    %1007 = vmatpush1.msra.mxu0 %v980
    %1008 = vmatprep.subr.mxu0 0.0
    %1009 = vmatpush1.msra.mxu0 0.0
    %1010 = vmatprep.subr.mxu0 0.0
    %1011 = vmatpush1.msra.mxu0 0.0
    %1012 = vmatprep.subr.mxu0 0.0
    %1013 = vmatpush1.msra.mxu0 0.0
    %1014 = vmatprep.subr.mxu0 0.0
    %1015 = vmatpush1.msra.mxu0 0.0
    %1016 = vmatprep.subr.mxu0 0.0
    %1017 = vmatpush1.msra.mxu0 0.0
    %1018 = vmatprep.subr.mxu0 0.0
    %1019 = vmatpush1.msra.mxu0 0.0
    %1020 = vmatprep.subr.mxu0 0.0
    %1021 = vmatpush1.msra.mxu0 0.0
    %1022 = vmatprep.subr.mxu0 0.0
    %1023 = vmatpush1.msra.mxu0 0.0
    %1024 = vmatprep.subr.mxu0 0.0
    %1025 = vmatpush1.msra.mxu0 0.0
    %1026 = vmatprep.subr.mxu0 0.0
    %1027 = vmatpush1.msra.mxu0 0.0
    %1028 = vmatprep.subr.mxu0 0.0
    %1029 = vmatpush1.msra.mxu0 0.0
    %1030 = vmatprep.subr.mxu0 0.0
    %1031 = vmatpush1.msra.mxu0 0.0
    %1032 = vmatprep.subr.mxu0 0.0
    %1033 = vmatpush1.msra.mxu0 0.0
    %1034 = vmatprep.subr.mxu0 0.0
    %1035 = vmatpush1.msra.mxu0 0.0
    %1036 = vmatprep.subr.mxu0 0.0
    %1037 = vmatpush1.msra.mxu0 0.0
    %1038 = vmatprep.subr.mxu0 0.0
    %1039 = vmatpush1.msra.mxu0 0.0
    %1040 = vmatprep.subr.mxu0 0.0
    %1041 = vmatpush1.msra.mxu0 0.0
    %1042 = vmatprep.subr.mxu0 0.0
    %1043 = vmatpush1.msra.mxu0 0.0
    %1044 = vmatprep.subr.mxu0 0.0
    %1045 = vmatpush1.msra.mxu0 0.0
    %1046 = vmatprep.subr.mxu0 0.0
    %1047 = vmatpush1.msra.mxu0 0.0
    %1048 = vmatprep.subr.mxu0 0.0
    %1049 = vmatpush1.msra.mxu0 0.0
    %1050 = vmatprep.subr.mxu0 0.0
    %1051 = vmatpush1.msra.mxu0 0.0
    %1052 = vmatprep.subr.mxu0 0.0
    %1053 = vmatpush1.msra.mxu0 0.0
    %1054 = vmatprep.subr.mxu0 0.0
    %1055 = vmatpush1.msra.mxu0 0.0
    %1056 = vmatprep.mubr.f32.mxu0 0.0
    %1057 = vmatmul.mubr.f32.gmra.mrb[0].mxu0 %v987
    %v1058 = vpop.f32.mrb[0].mxu0
    %v1059 = vadd.f32 %v984, %v1058
    %v1060 = vpop.f32.mrb[0].mxu0
    %1061 = vmatprep.mubr.f32.mxu0 0.0
    %1062 = vmatmul.mubr.f32.gmra.mrb[0].mxu0 %v990
    %v1063 = vpop.f32.mrb[0].mxu0
    %v1064 = vadd.f32 %v984, %v1063
    %v1065 = vpop.f32.mrb[0].mxu0
    %1066 = vdwg.mxu0
    %v1067 = vadd.f32 %v864, %v1059
    %v1068 = vadd.f32 %v865, %v1064
    %v1069 = vsel %vm167, %v1067, 0.0
    %1070 = vadd.xlane.f32.xlu0 %v1069
    %v1071 = vpop.xlane.xlu0 %1070
    %v1072 = vsel %vm167, %v1068, 0.0
    %1073 = vadd.xlane.f32.xlu0 %v1072
    %v1074 = vpop.xlane.xlu0 %1073
    %v1075 = vmul.f32 %v1071, %v174
    %v1076 = vmul.f32 %v1074, %v174
    %v1077 = vsub.f32 %v1067, %v1075
    %v1078 = vsub.f32 %v1068, %v1076
    %v1079 = vmul.f32 %v1077, %v1077
    %v1080 = vmul.f32 %v1078, %v1078
    %v1081 = vsel %vm167, %v1079, 0.0
    %1082 = vadd.xlane.f32.xlu0 %v1081
    %v1083 = vpop.xlane.xlu0 %1082
    %v1084 = vsel %vm167, %v1080, 0.0
    %1085 = vadd.xlane.f32.xlu0 %v1084
    %v1086 = vpop.xlane.xlu0 %1085
    %v1087 = vmul.f32 %v1083, %v174
    %v1088 = vmul.f32 %v1086, %v174
    %v1089 = vadd.f32 %v1087, 1e-12
    %v1090 = vadd.f32 %v1088, 1e-12
    %v1091 = vrsqrt.pop %v1089
    %v1092 = vrsqrt.pop %v1090
    %v1093 = vmul.f32 %v1077, %v1091
    %v1094 = vmul.f32 %v1078, %v1092
    %v1095 = vlaneseq
    %v1096 = vshrl.u32 %v1095, 7
    %v1097 = vsub.s32 6, %v1096
    %v1098 = vrot.slane %v230, %v1097
    %v1099 = vmul.f32 %v1093, %v1098
    %v1100 = vmul.f32 %v1094, %v1098
    %v1101 = vlaneseq
    %v1102 = vshrl.u32 %v1101, 7
    %v1103 = vsub.s32 7, %v1102
    %v1104 = vrot.slane %v230, %v1103
    %v1105 = vadd.f32 %v1099, %v1104
    %v1106 = vadd.f32 %v1100, %v1104
    %s1107 = scalar_lea.vmem [#allocation2], 8
    %v1108 = vld [vmem:[%s1107] sm:$0xff]
    %s1109 = scalar_lea.vmem %s3, 32
    %v1110 = vld [vmem:[%s1109] sm:$0xff]
    %v1111 = vld [vmem:[%s1109 + $0x8] sm:$0xff]
    %v1112 = vld [vmem:[%s1109 + $0x10] sm:$0xff]
    %v1113 = vld [vmem:[%s1109 + $0x18] sm:$0xff]
    %v1114 = vlaneseq
    %v1115 = vshrl.u32 %v1114, 7
    %v1116 = vsub.s32 0, %v1115
    %v1117 = vrot.slane %v1108, %v1116
    %v1119 = vsel %vm167, %v1105, 0
    %v1122 = vsel %vm167, %v1106, 0
    %1124 = vmatprep.subr.mxu0 0.0
    %1125 = vmatpush1.msra.mxu0 %v1110
    %1126 = vmatprep.subr.mxu0 0.0
    %1127 = vmatpush1.msra.mxu0 %v1111
    %1128 = vmatprep.subr.mxu0 0.0
    %1129 = vmatpush1.msra.mxu0 %v1112
    %1130 = vmatprep.subr.mxu0 0.0
    %1131 = vmatpush1.msra.mxu0 %v1113
    %1132 = vmatprep.subr.mxu0 0.0
    %1133 = vmatpush1.msra.mxu0 0.0
    %1134 = vmatprep.subr.mxu0 0.0
    %1135 = vmatpush1.msra.mxu0 0.0
    %1136 = vmatprep.subr.mxu0 0.0
    %1137 = vmatpush1.msra.mxu0 0.0
    %1138 = vmatprep.subr.mxu0 0.0
    %1139 = vmatpush1.msra.mxu0 0.0
    %1140 = vmatprep.subr.mxu0 0.0
    %1141 = vmatpush1.msra.mxu0 0.0
    %1142 = vmatprep.subr.mxu0 0.0
    %1143 = vmatpush1.msra.mxu0 0.0
    %1144 = vmatprep.subr.mxu0 0.0
    %1145 = vmatpush1.msra.mxu0 0.0
    %1146 = vmatprep.subr.mxu0 0.0
    %1147 = vmatpush1.msra.mxu0 0.0
    %1148 = vmatprep.subr.mxu0 0.0
    %1149 = vmatpush1.msra.mxu0 0.0
    %1150 = vmatprep.subr.mxu0 0.0
    %1151 = vmatpush1.msra.mxu0 0.0
    %1152 = vmatprep.subr.mxu0 0.0
    %1153 = vmatpush1.msra.mxu0 0.0
    %1154 = vmatprep.subr.mxu0 0.0
    %1155 = vmatpush1.msra.mxu0 0.0
    %1156 = vmatprep.subr.mxu0 0.0
    %1157 = vmatpush1.msra.mxu0 0.0
    %1158 = vmatprep.subr.mxu0 0.0
    %1159 = vmatpush1.msra.mxu0 0.0
    %1160 = vmatprep.subr.mxu0 0.0
    %1161 = vmatpush1.msra.mxu0 0.0
    %1162 = vmatprep.subr.mxu0 0.0
    %1163 = vmatpush1.msra.mxu0 0.0
    %1164 = vmatprep.subr.mxu0 0.0
    %1165 = vmatpush1.msra.mxu0 0.0
    %1166 = vmatprep.subr.mxu0 0.0
    %1167 = vmatpush1.msra.mxu0 0.0
    %1168 = vmatprep.subr.mxu0 0.0
    %1169 = vmatpush1.msra.mxu0 0.0
    %1170 = vmatprep.subr.mxu0 0.0
    %1171 = vmatpush1.msra.mxu0 0.0
    %1172 = vmatprep.subr.mxu0 0.0
    %1173 = vmatpush1.msra.mxu0 0.0
    %1174 = vmatprep.subr.mxu0 0.0
    %1175 = vmatpush1.msra.mxu0 0.0
    %1176 = vmatprep.subr.mxu0 0.0
    %1177 = vmatpush1.msra.mxu0 0.0
    %1178 = vmatprep.subr.mxu0 0.0
    %1179 = vmatpush1.msra.mxu0 0.0
    %1180 = vmatprep.subr.mxu0 0.0
    %1181 = vmatpush1.msra.mxu0 0.0
    %1182 = vmatprep.subr.mxu0 0.0
    %1183 = vmatpush1.msra.mxu0 0.0
    %1184 = vmatprep.subr.mxu0 0.0
    %1185 = vmatpush1.msra.mxu0 0.0
    %1186 = vmatprep.subr.mxu0 0.0
    %1187 = vmatpush1.msra.mxu0 0.0
    %1188 = vmatprep.mubr.f32.mxu0 0.0
    %1189 = vmatmul.mubr.f32.gmra.mrb[0].mxu0 %v1119
    %v1190 = vpop.f32.mrb[0].mxu0
    %v1191 = vadd.f32 %v1117, %v1190
    %v1192 = vpop.f32.mrb[0].mxu0
    %1193 = vmatprep.mubr.f32.mxu0 0.0
    %1194 = vmatmul.mubr.f32.gmra.mrb[0].mxu0 %v1122
    %v1195 = vpop.f32.mrb[0].mxu0
    %v1196 = vadd.f32 %v1117, %v1195
    %v1197 = vpop.f32.mrb[0].mxu0
    %1198 = vdwg.mxu0
    %1201 = vrot.lane.b32.xlu0 %v1191, 112
    %v1202 = vpop.permute.xlu0 %1201
    %1203 = vrot.lane.b32.xlu0 %v1196, 112
    %v1204 = vpop.permute.xlu0 %1203
    %1205 = vrot.lane.b32.xlu0 %v1191, 96
    %v1206 = vpop.permute.xlu0 %1205
    %1207 = vrot.lane.b32.xlu0 %v1196, 96
    %v1208 = vpop.permute.xlu0 %1207
    %v1209 = vsel %vm330, %v1191, 0
    %v1211 = vsel %vm330, %v1196, 0
    %v1213 = vsel %vm330, %v1206, 0
    %v1215 = vsel %vm330, %v1208, 0
    %1217 = vmatprep.subr.mxu0 0.0
    %1218 = vmatpush1.xpose.msra.mxu0 %v1213
    %1219 = vmatprep.subr.mxu0 0.0
    %1220 = vmatpush1.xpose.msra.mxu0 %v1215
    %1221 = vmatprep.subr.mxu0 0.0
    %1222 = vmatpush1.xpose.msra.mxu0 0.0
    %1223 = vmatprep.subr.mxu0 0.0
    %1224 = vmatpush1.xpose.msra.mxu0 0.0
    %1225 = vmatprep.subr.mxu0 0.0
    %1226 = vmatpush1.xpose.msra.mxu0 0.0
    %1227 = vmatprep.subr.mxu0 0.0
    %1228 = vmatpush1.xpose.msra.mxu0 0.0
    %1229 = vmatprep.subr.mxu0 0.0
    %1230 = vmatpush1.xpose.msra.mxu0 0.0
    %1231 = vmatprep.subr.mxu0 0.0
    %1232 = vmatpush1.xpose.msra.mxu0 0.0
    %1233 = vmatprep.subr.mxu0 0.0
    %1234 = vmatpush1.xpose.msra.mxu0 0.0
    %1235 = vmatprep.subr.mxu0 0.0
    %1236 = vmatpush1.xpose.msra.mxu0 0.0
    %1237 = vmatprep.subr.mxu0 0.0
    %1238 = vmatpush1.xpose.msra.mxu0 0.0
    %1239 = vmatprep.subr.mxu0 0.0
    %1240 = vmatpush1.xpose.msra.mxu0 0.0
    %1241 = vmatprep.subr.mxu0 0.0
    %1242 = vmatpush1.xpose.msra.mxu0 0.0
    %1243 = vmatprep.subr.mxu0 0.0
    %1244 = vmatpush1.xpose.msra.mxu0 0.0
    %1245 = vmatprep.subr.mxu0 0.0
    %1246 = vmatpush1.xpose.msra.mxu0 0.0
    %1247 = vmatprep.subr.mxu0 0.0
    %1248 = vmatpush1.xpose.msra.mxu0 0.0
    %1249 = vmatprep.subr.mxu0 0.0
    %1250 = vmatpush1.xpose.msra.mxu0 0.0
    %1251 = vmatprep.subr.mxu0 0.0
    %1252 = vmatpush1.xpose.msra.mxu0 0.0
    %1253 = vmatprep.subr.mxu0 0.0
    %1254 = vmatpush1.xpose.msra.mxu0 0.0
    %1255 = vmatprep.subr.mxu0 0.0
    %1256 = vmatpush1.xpose.msra.mxu0 0.0
    %1257 = vmatprep.subr.mxu0 0.0
    %1258 = vmatpush1.xpose.msra.mxu0 0.0
    %1259 = vmatprep.subr.mxu0 0.0
    %1260 = vmatpush1.xpose.msra.mxu0 0.0
    %1261 = vmatprep.subr.mxu0 0.0
    %1262 = vmatpush1.xpose.msra.mxu0 0.0
    %1263 = vmatprep.subr.mxu0 0.0
    %1264 = vmatpush1.xpose.msra.mxu0 0.0
    %1265 = vmatprep.subr.mxu0 0.0
    %1266 = vmatpush1.xpose.msra.mxu0 0.0
    %1267 = vmatprep.subr.mxu0 0.0
    %1268 = vmatpush1.xpose.msra.mxu0 0.0
    %1269 = vmatprep.subr.mxu0 0.0
    %1270 = vmatpush1.xpose.msra.mxu0 0.0
    %1271 = vmatprep.subr.mxu0 0.0
    %1272 = vmatpush1.xpose.msra.mxu0 0.0
    %1273 = vmatprep.subr.mxu0 0.0
    %1274 = vmatpush1.xpose.msra.mxu0 0.0
    %1275 = vmatprep.subr.mxu0 0.0
    %1276 = vmatpush1.xpose.msra.mxu0 0.0
    %1277 = vmatprep.subr.mxu0 0.0
    %1278 = vmatpush1.xpose.msra.mxu0 0.0
    %1279 = vmatprep.subr.mxu0 0.0
    %1280 = vmatpush1.xpose.msra.mxu0 0.0
    %1281 = vmatprep.mubr.f32.mxu0 0.0
    %1282 = vmatmul.mubr.f32.gmra.mrb[0].mxu0 %v1209
    %v1283 = vpop.f32.mrb[0].mxu0
    %v1284 = vadd.f32 0.0, %v1283
    %v1285 = vpop.f32.mrb[0].mxu0
    %1286 = vmatprep.mubr.f32.mxu0 0.0
    %1287 = vmatmul.mubr.f32.gmra.mrb[0].mxu0 %v1211
    %v1288 = vpop.f32.mrb[0].mxu0
    %v1289 = vadd.f32 0.0, %v1288
    %v1290 = vpop.f32.mrb[0].mxu0
    %1291 = vdwg.mxu0
    %1292 = vrot.lane.b32.xlu0 %v1202, 96
    %v1293 = vpop.permute.xlu0 %1292
    %1294 = vrot.lane.b32.xlu0 %v1204, 96
    %v1295 = vpop.permute.xlu0 %1294
    %v1296 = vsel %vm330, %v1202, 0
    %v1298 = vsel %vm330, %v1204, 0
    %v1300 = vsel %vm330, %v1293, 0
    %v1302 = vsel %vm330, %v1295, 0
    %1304 = vmatprep.subr.mxu0 0.0
    %1305 = vmatpush1.xpose.msra.mxu0 %v1300
    %1306 = vmatprep.subr.mxu0 0.0
    %1307 = vmatpush1.xpose.msra.mxu0 %v1302
    %1308 = vmatprep.subr.mxu0 0.0
    %1309 = vmatpush1.xpose.msra.mxu0 0.0
    %1310 = vmatprep.subr.mxu0 0.0
    %1311 = vmatpush1.xpose.msra.mxu0 0.0
    %1312 = vmatprep.subr.mxu0 0.0
    %1313 = vmatpush1.xpose.msra.mxu0 0.0
    %1314 = vmatprep.subr.mxu0 0.0
    %1315 = vmatpush1.xpose.msra.mxu0 0.0
    %1316 = vmatprep.subr.mxu0 0.0
    %1317 = vmatpush1.xpose.msra.mxu0 0.0
    %1318 = vmatprep.subr.mxu0 0.0
    %1319 = vmatpush1.xpose.msra.mxu0 0.0
    %1320 = vmatprep.subr.mxu0 0.0
    %1321 = vmatpush1.xpose.msra.mxu0 0.0
    %1322 = vmatprep.subr.mxu0 0.0
    %1323 = vmatpush1.xpose.msra.mxu0 0.0
    %1324 = vmatprep.subr.mxu0 0.0
    %1325 = vmatpush1.xpose.msra.mxu0 0.0
    %1326 = vmatprep.subr.mxu0 0.0
    %1327 = vmatpush1.xpose.msra.mxu0 0.0
    %1328 = vmatprep.subr.mxu0 0.0
    %1329 = vmatpush1.xpose.msra.mxu0 0.0
    %1330 = vmatprep.subr.mxu0 0.0
    %1331 = vmatpush1.xpose.msra.mxu0 0.0
    %1332 = vmatprep.subr.mxu0 0.0
    %1333 = vmatpush1.xpose.msra.mxu0 0.0
    %1334 = vmatprep.subr.mxu0 0.0
    %1335 = vmatpush1.xpose.msra.mxu0 0.0
    %1336 = vmatprep.subr.mxu0 0.0
    %1337 = vmatpush1.xpose.msra.mxu0 0.0
    %1338 = vmatprep.subr.mxu0 0.0
    %1339 = vmatpush1.xpose.msra.mxu0 0.0
    %1340 = vmatprep.subr.mxu0 0.0
    %1341 = vmatpush1.xpose.msra.mxu0 0.0
    %1342 = vmatprep.subr.mxu0 0.0
    %1343 = vmatpush1.xpose.msra.mxu0 0.0
    %1344 = vmatprep.subr.mxu0 0.0
    %1345 = vmatpush1.xpose.msra.mxu0 0.0
    %1346 = vmatprep.subr.mxu0 0.0
    %1347 = vmatpush1.xpose.msra.mxu0 0.0
    %1348 = vmatprep.subr.mxu0 0.0
    %1349 = vmatpush1.xpose.msra.mxu0 0.0
    %1350 = vmatprep.subr.mxu0 0.0
    %1351 = vmatpush1.xpose.msra.mxu0 0.0
    %1352 = vmatprep.subr.mxu0 0.0
    %1353 = vmatpush1.xpose.msra.mxu0 0.0
    %1354 = vmatprep.subr.mxu0 0.0
    %1355 = vmatpush1.xpose.msra.mxu0 0.0
    %1356 = vmatprep.subr.mxu0 0.0
    %1357 = vmatpush1.xpose.msra.mxu0 0.0
    %1358 = vmatprep.subr.mxu0 0.0
    %1359 = vmatpush1.xpose.msra.mxu0 0.0
    %1360 = vmatprep.subr.mxu0 0.0
    %1361 = vmatpush1.xpose.msra.mxu0 0.0
    %1362 = vmatprep.subr.mxu0 0.0
    %1363 = vmatpush1.xpose.msra.mxu0 0.0
    %1364 = vmatprep.subr.mxu0 0.0
    %1365 = vmatpush1.xpose.msra.mxu0 0.0
    %1366 = vmatprep.subr.mxu0 0.0
    %1367 = vmatpush1.xpose.msra.mxu0 0.0
    %1368 = vmatprep.mubr.f32.mxu0 0.0
    %1369 = vmatmul.mubr.f32.gmra.mrb[0].mxu0 %v1296
    %v1370 = vpop.f32.mrb[0].mxu0
    %v1371 = vadd.f32 0.0, %v1370
    %v1372 = vpop.f32.mrb[0].mxu0
    %1373 = vmatprep.mubr.f32.mxu0 0.0
    %1374 = vmatmul.mubr.f32.gmra.mrb[0].mxu0 %v1298
    %v1375 = vpop.f32.mrb[0].mxu0
    %v1376 = vadd.f32 0.0, %v1375
    %v1377 = vpop.f32.mrb[0].mxu0
    %1378 = vdwg.mxu0
    %v1379 = vmul.f32 %v1284, 0.25
    %v1380 = vmul.f32 %v1289, 0.25
    %v1381 = vmul.f32 %v1371, 0.25
    %v1382 = vmul.f32 %v1376, 0.25
    %v1383 = vadd.f32 %v1379, %v228
    %v1384 = vadd.f32 %v1380, %v229
    %v1385 = vadd.f32 %v1381, %v228
    %v1386 = vadd.f32 %v1382, %v229
    %v1387 = vsel %vm330, %v1383, -inf
    %1388 = vmax.xlane.f32.xlu0 %v1387
    %v1389 = vpop.xlane.xlu0 %1388
    %v1390 = vsel %vm330, %v1384, -inf
    %1391 = vmax.xlane.f32.xlu0 %v1390
    %v1392 = vpop.xlane.xlu0 %1391
    %v1393 = vsel %vm330, %v1385, -inf
    %1394 = vmax.xlane.f32.xlu0 %v1393
    %v1395 = vpop.xlane.xlu0 %1394
    %v1396 = vsel %vm330, %v1386, -inf
    %1397 = vmax.xlane.f32.xlu0 %v1396
    %v1398 = vpop.xlane.xlu0 %1397
    %v1399 = vsub.f32 %v1383, %v1389
    %v1400 = vsub.f32 %v1384, %v1392
    %v1401 = vsub.f32 %v1385, %v1395
    %v1402 = vsub.f32 %v1386, %v1398
    %v1403 = vmul.f32 %v1399, 1.442695
    %v1404 = vpow.pop %v1403
    %v1405 = vmul.f32 %v1400, 1.442695
    %v1406 = vpow.pop %v1405
    %v1407 = vmul.f32 %v1401, 1.442695
    %v1408 = vpow.pop %v1407
    %v1409 = vmul.f32 %v1402, 1.442695
    %v1410 = vpow.pop %v1409
    %v1411 = vsel %vm330, %v1404, 0.0
    %1412 = vadd.xlane.f32.xlu0 %v1411
    %v1413 = vpop.xlane.xlu0 %1412
    %v1414 = vsel %vm330, %v1406, 0.0
    %1415 = vadd.xlane.f32.xlu0 %v1414
    %v1416 = vpop.xlane.xlu0 %1415
    %v1417 = vsel %vm330, %v1408, 0.0
    %1418 = vadd.xlane.f32.xlu0 %v1417
    %v1419 = vpop.xlane.xlu0 %1418
    %v1420 = vsel %vm330, %v1410, 0.0
    %1421 = vadd.xlane.f32.xlu0 %v1420
    %v1422 = vpop.xlane.xlu0 %1421
    %v1423 = vrcp.pop %v1413
    %v1424 = vrcp.pop %v1416
    %v1425 = vrcp.pop %v1419
    %v1426 = vrcp.pop %v1422
    %v1427 = vmul.f32 %v1404, %v1423
    %v1428 = vmul.f32 %v1406, %v1424
    %v1429 = vmul.f32 %v1408, %v1425
    %v1430 = vmul.f32 %v1410, %v1426
    %1431 = vrot.lane.b32.xlu0 %v1191, 64
    %v1432 = vpop.permute.xlu0 %1431
    %1433 = vrot.lane.b32.xlu0 %v1196, 64
    %v1434 = vpop.permute.xlu0 %1433
    %v1438 = vsel %vm330, %v1427, 0
    %v1441 = vsel %vm330, %v1428, 0
    %1443 = vmatprep.subr.mxu0 0.0
    %1444 = vmatpush1.msra.mxu0 %v1432
    %1445 = vmatprep.subr.mxu0 0.0
    %1446 = vmatpush1.msra.mxu0 %v1434
    %1447 = vmatprep.subr.mxu0 0.0
    %1448 = vmatpush1.msra.mxu0 0.0
    %1449 = vmatprep.subr.mxu0 0.0
    %1450 = vmatpush1.msra.mxu0 0.0
    %1451 = vmatprep.subr.mxu0 0.0
    %1452 = vmatpush1.msra.mxu0 0.0
    %1453 = vmatprep.subr.mxu0 0.0
    %1454 = vmatpush1.msra.mxu0 0.0
    %1455 = vmatprep.subr.mxu0 0.0
    %1456 = vmatpush1.msra.mxu0 0.0
    %1457 = vmatprep.subr.mxu0 0.0
    %1458 = vmatpush1.msra.mxu0 0.0
    %1459 = vmatprep.subr.mxu0 0.0
    %1460 = vmatpush1.msra.mxu0 0.0
    %1461 = vmatprep.subr.mxu0 0.0
    %1462 = vmatpush1.msra.mxu0 0.0
    %1463 = vmatprep.subr.mxu0 0.0
    %1464 = vmatpush1.msra.mxu0 0.0
    %1465 = vmatprep.subr.mxu0 0.0
    %1466 = vmatpush1.msra.mxu0 0.0
    %1467 = vmatprep.subr.mxu0 0.0
    %1468 = vmatpush1.msra.mxu0 0.0
    %1469 = vmatprep.subr.mxu0 0.0
    %1470 = vmatpush1.msra.mxu0 0.0
    %1471 = vmatprep.subr.mxu0 0.0
    %1472 = vmatpush1.msra.mxu0 0.0
    %1473 = vmatprep.subr.mxu0 0.0
    %1474 = vmatpush1.msra.mxu0 0.0
    %1475 = vmatprep.subr.mxu0 0.0
    %1476 = vmatpush1.msra.mxu0 0.0
    %1477 = vmatprep.subr.mxu0 0.0
    %1478 = vmatpush1.msra.mxu0 0.0
    %1479 = vmatprep.subr.mxu0 0.0
    %1480 = vmatpush1.msra.mxu0 0.0
    %1481 = vmatprep.subr.mxu0 0.0
    %1482 = vmatpush1.msra.mxu0 0.0
    %1483 = vmatprep.subr.mxu0 0.0
    %1484 = vmatpush1.msra.mxu0 0.0
    %1485 = vmatprep.subr.mxu0 0.0
    %1486 = vmatpush1.msra.mxu0 0.0
    %1487 = vmatprep.subr.mxu0 0.0
    %1488 = vmatpush1.msra.mxu0 0.0
    %1489 = vmatprep.subr.mxu0 0.0
    %1490 = vmatpush1.msra.mxu0 0.0
    %1491 = vmatprep.subr.mxu0 0.0
    %1492 = vmatpush1.msra.mxu0 0.0
    %1493 = vmatprep.subr.mxu0 0.0
    %1494 = vmatpush1.msra.mxu0 0.0
    %1495 = vmatprep.subr.mxu0 0.0
    %1496 = vmatpush1.msra.mxu0 0.0
    %1497 = vmatprep.subr.mxu0 0.0
    %1498 = vmatpush1.msra.mxu0 0.0
    %1499 = vmatprep.subr.mxu0 0.0
    %1500 = vmatpush1.msra.mxu0 0.0
    %1501 = vmatprep.subr.mxu0 0.0
    %1502 = vmatpush1.msra.mxu0 0.0
    %1503 = vmatprep.subr.mxu0 0.0
    %1504 = vmatpush1.msra.mxu0 0.0
    %1505 = vmatprep.subr.mxu0 0.0
    %1506 = vmatpush1.msra.mxu0 0.0
    %1507 = vmatprep.mubr.f32.mxu0 0.0
    %1508 = vmatmul.mubr.f32.gmra.mrb[0].mxu0 %v1438
    %v1509 = vpop.f32.mrb[0].mxu0
    %v1510 = vadd.f32 0.0, %v1509
    %v1511 = vpop.f32.mrb[0].mxu0
    %1512 = vmatprep.mubr.f32.mxu0 0.0
    %1513 = vmatmul.mubr.f32.gmra.mrb[0].mxu0 %v1441
    %v1514 = vpop.f32.mrb[0].mxu0
    %v1515 = vadd.f32 0.0, %v1514
    %v1516 = vpop.f32.mrb[0].mxu0
    %1517 = vdwg.mxu0
    %1518 = vrot.lane.b32.xlu0 %v1202, 64
    %v1519 = vpop.permute.xlu0 %1518
    %1520 = vrot.lane.b32.xlu0 %v1204, 64
    %v1521 = vpop.permute.xlu0 %1520
    %v1525 = vsel %vm330, %v1429, 0
    %v1528 = vsel %vm330, %v1430, 0
    %1530 = vmatprep.subr.mxu0 0.0
    %1531 = vmatpush1.msra.mxu0 %v1519
    %1532 = vmatprep.subr.mxu0 0.0
    %1533 = vmatpush1.msra.mxu0 %v1521
    %1534 = vmatprep.subr.mxu0 0.0
    %1535 = vmatpush1.msra.mxu0 0.0
    %1536 = vmatprep.subr.mxu0 0.0
    %1537 = vmatpush1.msra.mxu0 0.0
    %1538 = vmatprep.subr.mxu0 0.0
    %1539 = vmatpush1.msra.mxu0 0.0
    %1540 = vmatprep.subr.mxu0 0.0
    %1541 = vmatpush1.msra.mxu0 0.0
    %1542 = vmatprep.subr.mxu0 0.0
    %1543 = vmatpush1.msra.mxu0 0.0
    %1544 = vmatprep.subr.mxu0 0.0
    %1545 = vmatpush1.msra.mxu0 0.0
    %1546 = vmatprep.subr.mxu0 0.0
    %1547 = vmatpush1.msra.mxu0 0.0
    %1548 = vmatprep.subr.mxu0 0.0
    %1549 = vmatpush1.msra.mxu0 0.0
    %1550 = vmatprep.subr.mxu0 0.0
    %1551 = vmatpush1.msra.mxu0 0.0
    %1552 = vmatprep.subr.mxu0 0.0
    %1553 = vmatpush1.msra.mxu0 0.0
    %1554 = vmatprep.subr.mxu0 0.0
    %1555 = vmatpush1.msra.mxu0 0.0
    %1556 = vmatprep.subr.mxu0 0.0
    %1557 = vmatpush1.msra.mxu0 0.0
    %1558 = vmatprep.subr.mxu0 0.0
    %1559 = vmatpush1.msra.mxu0 0.0
    %1560 = vmatprep.subr.mxu0 0.0
    %1561 = vmatpush1.msra.mxu0 0.0
    %1562 = vmatprep.subr.mxu0 0.0
    %1563 = vmatpush1.msra.mxu0 0.0
    %1564 = vmatprep.subr.mxu0 0.0
    %1565 = vmatpush1.msra.mxu0 0.0
    %1566 = vmatprep.subr.mxu0 0.0
    %1567 = vmatpush1.msra.mxu0 0.0
    %1568 = vmatprep.subr.mxu0 0.0
    %1569 = vmatpush1.msra.mxu0 0.0
    %1570 = vmatprep.subr.mxu0 0.0
    %1571 = vmatpush1.msra.mxu0 0.0
    %1572 = vmatprep.subr.mxu0 0.0
    %1573 = vmatpush1.msra.mxu0 0.0
    %1574 = vmatprep.subr.mxu0 0.0
    %1575 = vmatpush1.msra.mxu0 0.0
    %1576 = vmatprep.subr.mxu0 0.0
    %1577 = vmatpush1.msra.mxu0 0.0
    %1578 = vmatprep.subr.mxu0 0.0
    %1579 = vmatpush1.msra.mxu0 0.0
    %1580 = vmatprep.subr.mxu0 0.0
    %1581 = vmatpush1.msra.mxu0 0.0
    %1582 = vmatprep.subr.mxu0 0.0
    %1583 = vmatpush1.msra.mxu0 0.0
    %1584 = vmatprep.subr.mxu0 0.0
    %1585 = vmatpush1.msra.mxu0 0.0
    %1586 = vmatprep.subr.mxu0 0.0
    %1587 = vmatpush1.msra.mxu0 0.0
    %1588 = vmatprep.subr.mxu0 0.0
    %1589 = vmatpush1.msra.mxu0 0.0
    %1590 = vmatprep.subr.mxu0 0.0
    %1591 = vmatpush1.msra.mxu0 0.0
    %1592 = vmatprep.subr.mxu0 0.0
    %1593 = vmatpush1.msra.mxu0 0.0
    %1594 = vmatprep.mubr.f32.mxu0 0.0
    %1595 = vmatmul.mubr.f32.gmra.mrb[0].mxu0 %v1525
    %v1596 = vpop.f32.mrb[0].mxu0
    %v1597 = vadd.f32 0.0, %v1596
    %v1598 = vpop.f32.mrb[0].mxu0
    %1599 = vmatprep.mubr.f32.mxu0 0.0
    %1600 = vmatmul.mubr.f32.gmra.mrb[0].mxu0 %v1528
    %v1601 = vpop.f32.mrb[0].mxu0
    %v1602 = vadd.f32 0.0, %v1601
    %v1603 = vpop.f32.mrb[0].mxu0
    %1604 = vdwg.mxu0
    %1607 = vrot.lane.b32.xlu0 %v1597, 16
    %v1608 = vpop.permute.xlu0 %1607
    %1609 = vrot.lane.b32.xlu0 %v1602, 16
    %v1610 = vpop.permute.xlu0 %1609
    %v1613 = vsel %vm330, %v1510, %v1608
    %v1614 = vsel %vm330, %v1515, %v1610
    %s1615 = scalar_lea.vmem %s4, 32
    %v1616 = vld [vmem:[%s1615] sm:$0xff]
    %v1617 = vld [vmem:[%s1615 + $0x8] sm:$0xff]
    %v1618 = vld [vmem:[%s1615 + $0x10] sm:$0xff]
    %v1619 = vld [vmem:[%s1615 + $0x18] sm:$0xff]
    %v1620 = vlaneseq
    %v1621 = vshrl.u32 %v1620, 7
    %v1622 = vsub.s32 1, %v1621
    %v1623 = vrot.slane %v1108, %v1622
    %v1625 = vsel %vm167, %v1613, 0
    %v1628 = vsel %vm167, %v1614, 0
    %1630 = vmatprep.subr.mxu0 0.0
    %1631 = vmatpush1.msra.mxu0 %v1616
    %1632 = vmatprep.subr.mxu0 0.0
    %1633 = vmatpush1.msra.mxu0 %v1617
    %1634 = vmatprep.subr.mxu0 0.0
    %1635 = vmatpush1.msra.mxu0 %v1618
    %1636 = vmatprep.subr.mxu0 0.0
    %1637 = vmatpush1.msra.mxu0 %v1619
    %1638 = vmatprep.subr.mxu0 0.0
    %1639 = vmatpush1.msra.mxu0 0.0
    %1640 = vmatprep.subr.mxu0 0.0
    %1641 = vmatpush1.msra.mxu0 0.0
    %1642 = vmatprep.subr.mxu0 0.0
    %1643 = vmatpush1.msra.mxu0 0.0
    %1644 = vmatprep.subr.mxu0 0.0
    %1645 = vmatpush1.msra.mxu0 0.0
    %1646 = vmatprep.subr.mxu0 0.0
    %1647 = vmatpush1.msra.mxu0 0.0
    %1648 = vmatprep.subr.mxu0 0.0
    %1649 = vmatpush1.msra.mxu0 0.0
    %1650 = vmatprep.subr.mxu0 0.0
    %1651 = vmatpush1.msra.mxu0 0.0
    %1652 = vmatprep.subr.mxu0 0.0
    %1653 = vmatpush1.msra.mxu0 0.0
    %1654 = vmatprep.subr.mxu0 0.0
    %1655 = vmatpush1.msra.mxu0 0.0
    %1656 = vmatprep.subr.mxu0 0.0
    %1657 = vmatpush1.msra.mxu0 0.0
    %1658 = vmatprep.subr.mxu0 0.0
    %1659 = vmatpush1.msra.mxu0 0.0
    %1660 = vmatprep.subr.mxu0 0.0
    %1661 = vmatpush1.msra.mxu0 0.0
    %1662 = vmatprep.subr.mxu0 0.0
    %1663 = vmatpush1.msra.mxu0 0.0
    %1664 = vmatprep.subr.mxu0 0.0
    %1665 = vmatpush1.msra.mxu0 0.0
    %1666 = vmatprep.subr.mxu0 0.0
    %1667 = vmatpush1.msra.mxu0 0.0
    %1668 = vmatprep.subr.mxu0 0.0
    %1669 = vmatpush1.msra.mxu0 0.0
    %1670 = vmatprep.subr.mxu0 0.0
    %1671 = vmatpush1.msra.mxu0 0.0
    %1672 = vmatprep.subr.mxu0 0.0
    %1673 = vmatpush1.msra.mxu0 0.0
    %1674 = vmatprep.subr.mxu0 0.0
    %1675 = vmatpush1.msra.mxu0 0.0
    %1676 = vmatprep.subr.mxu0 0.0
    %1677 = vmatpush1.msra.mxu0 0.0
    %1678 = vmatprep.subr.mxu0 0.0
    %1679 = vmatpush1.msra.mxu0 0.0
    %1680 = vmatprep.subr.mxu0 0.0
    %1681 = vmatpush1.msra.mxu0 0.0
    %1682 = vmatprep.subr.mxu0 0.0
    %1683 = vmatpush1.msra.mxu0 0.0
    %1684 = vmatprep.subr.mxu0 0.0
    %1685 = vmatpush1.msra.mxu0 0.0
    %1686 = vmatprep.subr.mxu0 0.0
    %1687 = vmatpush1.msra.mxu0 0.0
    %1688 = vmatprep.subr.mxu0 0.0
    %1689 = vmatpush1.msra.mxu0 0.0
    %1690 = vmatprep.subr.mxu0 0.0
    %1691 = vmatpush1.msra.mxu0 0.0
    %1692 = vmatprep.subr.mxu0 0.0
    %1693 = vmatpush1.msra.mxu0 0.0
    %1694 = vmatprep.mubr.f32.mxu0 0.0
    %1695 = vmatmul.mubr.f32.gmra.mrb[0].mxu0 %v1625
    %v1696 = vpop.f32.mrb[0].mxu0
    %v1697 = vadd.f32 %v1623, %v1696
    %v1698 = vpop.f32.mrb[0].mxu0
    %1699 = vmatprep.mubr.f32.mxu0 0.0
    %1700 = vmatmul.mubr.f32.gmra.mrb[0].mxu0 %v1628
    %v1701 = vpop.f32.mrb[0].mxu0
    %v1702 = vadd.f32 %v1623, %v1701
    %v1703 = vpop.f32.mrb[0].mxu0
    %1704 = vdwg.mxu0
    %v1705 = vadd.f32 %v1105, %v1697
    %v1706 = vadd.f32 %v1106, %v1702
    %v1707 = vsel %vm167, %v1705, 0.0
    %1708 = vadd.xlane.f32.xlu0 %v1707
    %v1709 = vpop.xlane.xlu0 %1708
    %v1710 = vsel %vm167, %v1706, 0.0
    %1711 = vadd.xlane.f32.xlu0 %v1710
    %v1712 = vpop.xlane.xlu0 %1711
    %v1713 = vmul.f32 %v1709, %v174
    %v1714 = vmul.f32 %v1712, %v174
    %v1715 = vsub.f32 %v1705, %v1713
    %v1716 = vsub.f32 %v1706, %v1714
    %v1717 = vmul.f32 %v1715, %v1715
    %v1718 = vmul.f32 %v1716, %v1716
    %v1719 = vsel %vm167, %v1717, 0.0
    %1720 = vadd.xlane.f32.xlu0 %v1719
    %v1721 = vpop.xlane.xlu0 %1720
    %v1722 = vsel %vm167, %v1718, 0.0
    %1723 = vadd.xlane.f32.xlu0 %v1722
    %v1724 = vpop.xlane.xlu0 %1723
    %v1725 = vmul.f32 %v1721, %v174
    %v1726 = vmul.f32 %v1724, %v174
    %v1727 = vadd.f32 %v1725, 1e-12
    %v1728 = vadd.f32 %v1726, 1e-12
    %v1729 = vrsqrt.pop %v1727
    %v1730 = vrsqrt.pop %v1728
    %v1731 = vmul.f32 %v1715, %v1729
    %v1732 = vmul.f32 %v1716, %v1730
    %v1733 = vlaneseq
    %v1734 = vshrl.u32 %v1733, 7
    %v1735 = vsub.s32 4, %v1734
    %v1736 = vrot.slane %v1108, %v1735
    %v1737 = vmul.f32 %v1731, %v1736
    %v1738 = vmul.f32 %v1732, %v1736
    %v1739 = vlaneseq
    %v1740 = vshrl.u32 %v1739, 7
    %v1741 = vsub.s32 5, %v1740
    %v1742 = vrot.slane %v1108, %v1741
    %v1743 = vadd.f32 %v1737, %v1742
    %v1744 = vadd.f32 %v1738, %v1742
    %s1745 = scalar_lea.vmem %s5, 32
    %v1746 = vld [vmem:[%s1745] sm:$0xff]
    %v1747 = vld [vmem:[%s1745 + $0x8] sm:$0xff]
    %v1748 = vld [vmem:[%s1745 + $0x10] sm:$0xff]
    %v1749 = vld [vmem:[%s1745 + $0x18] sm:$0xff]
    %v1750 = vlaneseq
    %v1751 = vshrl.u32 %v1750, 7
    %v1752 = vsub.s32 2, %v1751
    %v1753 = vrot.slane %v1108, %v1752
    %v1755 = vsel %vm167, %v1743, 0
    %v1758 = vsel %vm167, %v1744, 0
    %1760 = vmatprep.subr.mxu0 0.0
    %1761 = vmatpush1.msra.mxu0 %v1746
    %1762 = vmatprep.subr.mxu0 0.0
    %1763 = vmatpush1.msra.mxu0 %v1747
    %1764 = vmatprep.subr.mxu0 0.0
    %1765 = vmatpush1.msra.mxu0 %v1748
    %1766 = vmatprep.subr.mxu0 0.0
    %1767 = vmatpush1.msra.mxu0 %v1749
    %1768 = vmatprep.subr.mxu0 0.0
    %1769 = vmatpush1.msra.mxu0 0.0
    %1770 = vmatprep.subr.mxu0 0.0
    %1771 = vmatpush1.msra.mxu0 0.0
    %1772 = vmatprep.subr.mxu0 0.0
    %1773 = vmatpush1.msra.mxu0 0.0
    %1774 = vmatprep.subr.mxu0 0.0
    %1775 = vmatpush1.msra.mxu0 0.0
    %1776 = vmatprep.subr.mxu0 0.0
    %1777 = vmatpush1.msra.mxu0 0.0
    %1778 = vmatprep.subr.mxu0 0.0
    %1779 = vmatpush1.msra.mxu0 0.0
    %1780 = vmatprep.subr.mxu0 0.0
    %1781 = vmatpush1.msra.mxu0 0.0
    %1782 = vmatprep.subr.mxu0 0.0
    %1783 = vmatpush1.msra.mxu0 0.0
    %1784 = vmatprep.subr.mxu0 0.0
    %1785 = vmatpush1.msra.mxu0 0.0
    %1786 = vmatprep.subr.mxu0 0.0
    %1787 = vmatpush1.msra.mxu0 0.0
    %1788 = vmatprep.subr.mxu0 0.0
    %1789 = vmatpush1.msra.mxu0 0.0
    %1790 = vmatprep.subr.mxu0 0.0
    %1791 = vmatpush1.msra.mxu0 0.0
    %1792 = vmatprep.subr.mxu0 0.0
    %1793 = vmatpush1.msra.mxu0 0.0
    %1794 = vmatprep.subr.mxu0 0.0
    %1795 = vmatpush1.msra.mxu0 0.0
    %1796 = vmatprep.subr.mxu0 0.0
    %1797 = vmatpush1.msra.mxu0 0.0
    %1798 = vmatprep.subr.mxu0 0.0
    %1799 = vmatpush1.msra.mxu0 0.0
    %1800 = vmatprep.subr.mxu0 0.0
    %1801 = vmatpush1.msra.mxu0 0.0
    %1802 = vmatprep.subr.mxu0 0.0
    %1803 = vmatpush1.msra.mxu0 0.0
    %1804 = vmatprep.subr.mxu0 0.0
    %1805 = vmatpush1.msra.mxu0 0.0
    %1806 = vmatprep.subr.mxu0 0.0
    %1807 = vmatpush1.msra.mxu0 0.0
    %1808 = vmatprep.subr.mxu0 0.0
    %1809 = vmatpush1.msra.mxu0 0.0
    %1810 = vmatprep.subr.mxu0 0.0
    %1811 = vmatpush1.msra.mxu0 0.0
    %1812 = vmatprep.subr.mxu0 0.0
    %1813 = vmatpush1.msra.mxu0 0.0
    %1814 = vmatprep.subr.mxu0 0.0
    %1815 = vmatpush1.msra.mxu0 0.0
    %1816 = vmatprep.subr.mxu0 0.0
    %1817 = vmatpush1.msra.mxu0 0.0
    %1818 = vmatprep.subr.mxu0 0.0
    %1819 = vmatpush1.msra.mxu0 0.0
    %1820 = vmatprep.subr.mxu0 0.0
    %1821 = vmatpush1.msra.mxu0 0.0
    %1822 = vmatprep.subr.mxu0 0.0
    %1823 = vmatpush1.msra.mxu0 0.0
    %1824 = vmatprep.mubr.f32.mxu0 0.0
    %1825 = vmatmul.mubr.f32.gmra.mrb[0].mxu0 %v1755
    %v1826 = vpop.f32.mrb[0].mxu0
    %v1827 = vadd.f32 %v1753, %v1826
    %v1828 = vpop.f32.mrb[0].mxu0
    %1829 = vmatprep.mubr.f32.mxu0 0.0
    %1830 = vmatmul.mubr.f32.gmra.mrb[0].mxu0 %v1758
    %v1831 = vpop.f32.mrb[0].mxu0
    %v1832 = vadd.f32 %v1753, %v1831
    %v1833 = vpop.f32.mrb[0].mxu0
    %1834 = vdwg.mxu0
    %v1835 = vmul.f32 %v1827, 0.5
    %v1836 = vmul.f32 %v1832, 0.5
    %v1837 = vmul.f32 %v1827, 0.044715
    %v1838 = vmul.f32 %v1832, 0.044715
    %v1839 = vmul.f32 %v1837, %v1827
    %v1840 = vmul.f32 %v1838, %v1832
    %v1841 = vmul.f32 %v1839, %v1827
    %v1842 = vmul.f32 %v1840, %v1832
    %v1843 = vadd.f32 %v1827, %v1841
    %v1844 = vadd.f32 %v1832, %v1842
    %v1845 = vmul.f32 %v1843, 0.7978846
    %v1846 = vmul.f32 %v1844, 0.7978846
    %v1847 = vtanh.pop %v1845
    %v1848 = vtanh.pop %v1846
    %v1849 = vadd.f32 %v1847, 1.0
    %v1850 = vadd.f32 %v1848, 1.0
    %v1851 = vmul.f32 %v1835, %v1849
    %v1852 = vmul.f32 %v1836, %v1850
    %s1853 = scalar_lea.vmem %s6, 64
    %v1854 = vld [vmem:[%s1853] sm:$0xff]
    %v1855 = vld [vmem:[%s1853 + $0x8] sm:$0xff]
    %v1856 = vld [vmem:[%s1853 + $0x10] sm:$0xff]
    %v1857 = vld [vmem:[%s1853 + $0x18] sm:$0xff]
    %v1858 = vld [vmem:[%s1853 + $0x20] sm:$0xff]
    %v1859 = vld [vmem:[%s1853 + $0x28] sm:$0xff]
    %v1860 = vld [vmem:[%s1853 + $0x30] sm:$0xff]
    %v1861 = vld [vmem:[%s1853 + $0x38] sm:$0xff]
    %v1862 = vlaneseq
    %v1863 = vshrl.u32 %v1862, 7
    %v1864 = vsub.s32 3, %v1863
    %v1865 = vrot.slane %v1108, %v1864
    %v1867 = vsel %vm985, %v1851, 0
    %v1870 = vsel %vm985, %v1852, 0
    %1872 = vmatprep.subr.mxu0 0.0
    %1873 = vmatpush1.msra.mxu0 %v1854
    %1874 = vmatprep.subr.mxu0 0.0
    %1875 = vmatpush1.msra.mxu0 %v1855
    %1876 = vmatprep.subr.mxu0 0.0
    %1877 = vmatpush1.msra.mxu0 %v1856
    %1878 = vmatprep.subr.mxu0 0.0
    %1879 = vmatpush1.msra.mxu0 %v1857
    %1880 = vmatprep.subr.mxu0 0.0
    %1881 = vmatpush1.msra.mxu0 %v1858
    %1882 = vmatprep.subr.mxu0 0.0
    %1883 = vmatpush1.msra.mxu0 %v1859
    %1884 = vmatprep.subr.mxu0 0.0
    %1885 = vmatpush1.msra.mxu0 %v1860
    %1886 = vmatprep.subr.mxu0 0.0
    %1887 = vmatpush1.msra.mxu0 %v1861
    %1888 = vmatprep.subr.mxu0 0.0
    %1889 = vmatpush1.msra.mxu0 0.0
    %1890 = vmatprep.subr.mxu0 0.0
    %1891 = vmatpush1.msra.mxu0 0.0
    %1892 = vmatprep.subr.mxu0 0.0
    %1893 = vmatpush1.msra.mxu0 0.0
    %1894 = vmatprep.subr.mxu0 0.0
    %1895 = vmatpush1.msra.mxu0 0.0
    %1896 = vmatprep.subr.mxu0 0.0
    %1897 = vmatpush1.msra.mxu0 0.0
    %1898 = vmatprep.subr.mxu0 0.0
    %1899 = vmatpush1.msra.mxu0 0.0
    %1900 = vmatprep.subr.mxu0 0.0
    %1901 = vmatpush1.msra.mxu0 0.0
    %1902 = vmatprep.subr.mxu0 0.0
    %1903 = vmatpush1.msra.mxu0 0.0
    %1904 = vmatprep.subr.mxu0 0.0
    %1905 = vmatpush1.msra.mxu0 0.0
    %1906 = vmatprep.subr.mxu0 0.0
    %1907 = vmatpush1.msra.mxu0 0.0
    %1908 = vmatprep.subr.mxu0 0.0
    %1909 = vmatpush1.msra.mxu0 0.0
    %1910 = vmatprep.subr.mxu0 0.0
    %1911 = vmatpush1.msra.mxu0 0.0
    %1912 = vmatprep.subr.mxu0 0.0
    %1913 = vmatpush1.msra.mxu0 0.0
    %1914 = vmatprep.subr.mxu0 0.0
    %1915 = vmatpush1.msra.mxu0 0.0
    %1916 = vmatprep.subr.mxu0 0.0
    %1917 = vmatpush1.msra.mxu0 0.0
    %1918 = vmatprep.subr.mxu0 0.0
    %1919 = vmatpush1.msra.mxu0 0.0
    %1920 = vmatprep.subr.mxu0 0.0
    %1921 = vmatpush1.msra.mxu0 0.0
    %1922 = vmatprep.subr.mxu0 0.0
    %1923 = vmatpush1.msra.mxu0 0.0
    %1924 = vmatprep.subr.mxu0 0.0
    %1925 = vmatpush1.msra.mxu0 0.0
    %1926 = vmatprep.subr.mxu0 0.0
    %1927 = vmatpush1.msra.mxu0 0.0
    %1928 = vmatprep.subr.mxu0 0.0
    %1929 = vmatpush1.msra.mxu0 0.0
    %1930 = vmatprep.subr.mxu0 0.0
    %1931 = vmatpush1.msra.mxu0 0.0
    %1932 = vmatprep.subr.mxu0 0.0
    %1933 = vmatpush1.msra.mxu0 0.0
    %1934 = vmatprep.subr.mxu0 0.0
    %1935 = vmatpush1.msra.mxu0 0.0
    %1936 = vmatprep.mubr.f32.mxu0 0.0
    %1937 = vmatmul.mubr.f32.gmra.mrb[0].mxu0 %v1867
    %v1938 = vpop.f32.mrb[0].mxu0
    %v1939 = vadd.f32 %v1865, %v1938
    %v1940 = vpop.f32.mrb[0].mxu0
    %1941 = vmatprep.mubr.f32.mxu0 0.0
    %1942 = vmatmul.mubr.f32.gmra.mrb[0].mxu0 %v1870
    %v1943 = vpop.f32.mrb[0].mxu0
    %v1944 = vadd.f32 %v1865, %v1943
    %v1945 = vpop.f32.mrb[0].mxu0
    %1946 = vdwg.mxu0
    %v1947 = vadd.f32 %v1743, %v1939
    %v1948 = vadd.f32 %v1744, %v1944
    %v1949 = vsel %vm167, %v1947, 0.0
    %1950 = vadd.xlane.f32.xlu0 %v1949
    %v1951 = vpop.xlane.xlu0 %1950
    %v1952 = vsel %vm167, %v1948, 0.0
    %1953 = vadd.xlane.f32.xlu0 %v1952
    %v1954 = vpop.xlane.xlu0 %1953
    %v1955 = vmul.f32 %v1951, %v174
    %v1956 = vmul.f32 %v1954, %v174
    %v1957 = vsub.f32 %v1947, %v1955
    %v1958 = vsub.f32 %v1948, %v1956
    %v1959 = vmul.f32 %v1957, %v1957
    %v1960 = vmul.f32 %v1958, %v1958
    %v1961 = vsel %vm167, %v1959, 0.0
    %1962 = vadd.xlane.f32.xlu0 %v1961
    %v1963 = vpop.xlane.xlu0 %1962
    %v1964 = vsel %vm167, %v1960, 0.0
    %1965 = vadd.xlane.f32.xlu0 %v1964
    %v1966 = vpop.xlane.xlu0 %1965
    %v1967 = vmul.f32 %v1963, %v174
    %v1968 = vmul.f32 %v1966, %v174
    %v1969 = vadd.f32 %v1967, 1e-12
    %v1970 = vadd.f32 %v1968, 1e-12
    %v1971 = vrsqrt.pop %v1969
    %v1972 = vrsqrt.pop %v1970
    %v1973 = vmul.f32 %v1957, %v1971
    %v1974 = vmul.f32 %v1958, %v1972
    %v1975 = vlaneseq
    %v1976 = vshrl.u32 %v1975, 7
    %v1977 = vsub.s32 6, %v1976
    %v1978 = vrot.slane %v1108, %v1977
    %v1979 = vmul.f32 %v1973, %v1978
    %v1980 = vmul.f32 %v1974, %v1978
    %v1981 = vlaneseq
    %v1982 = vshrl.u32 %v1981, 7
    %v1983 = vsub.s32 7, %v1982
    %v1984 = vrot.slane %v1108, %v1983
    %v1985 = vadd.f32 %v1979, %v1984
    %v1986 = vadd.f32 %v1980, %v1984
    %v1987 = vld [vmem:[%s8] sm:$0xff]
    %v1988 = vld [vmem:[%s8 + $0x8] sm:$0xff]
    %v1989 = vld [vmem:[%s8 + $0x10] sm:$0xff]
    %v1990 = vld [vmem:[%s8 + $0x18] sm:$0xff]
    %v1991 = vld [vmem:[%s8 + $0x20] sm:$0xff]
    %v1992 = vlaneseq
    %v1993 = vshrl.u32 %v1992, 7
    %v1994 = vsub.s32 0, %v1993
    %v1995 = vrot.slane %v1991, %v1994
    %v1998 = vrot.slane %v1986, 7
    %vm1999 = vcmask 1041409
    %v2000 = vsel %vm1999, %v1998, %v1985
    %v2001 = vsel %vm167, %v2000, 0
    %2003 = vmatprep.subr.mxu0 0.0
    %2004 = vmatpush1.msra.mxu0 %v1987
    %2005 = vmatprep.subr.mxu0 0.0
    %2006 = vmatpush1.msra.mxu0 %v1988
    %2007 = vmatprep.subr.mxu0 0.0
    %2008 = vmatpush1.msra.mxu0 %v1989
    %2009 = vmatprep.subr.mxu0 0.0
    %2010 = vmatpush1.msra.mxu0 %v1990
    %2011 = vmatprep.subr.mxu0 0.0
    %2012 = vmatpush1.msra.mxu0 0.0
    %2013 = vmatprep.subr.mxu0 0.0
    %2014 = vmatpush1.msra.mxu0 0.0
    %2015 = vmatprep.subr.mxu0 0.0
    %2016 = vmatpush1.msra.mxu0 0.0
    %2017 = vmatprep.subr.mxu0 0.0
    %2018 = vmatpush1.msra.mxu0 0.0
    %2019 = vmatprep.subr.mxu0 0.0
    %2020 = vmatpush1.msra.mxu0 0.0
    %2021 = vmatprep.subr.mxu0 0.0
    %2022 = vmatpush1.msra.mxu0 0.0
    %2023 = vmatprep.subr.mxu0 0.0
    %2024 = vmatpush1.msra.mxu0 0.0
    %2025 = vmatprep.subr.mxu0 0.0
    %2026 = vmatpush1.msra.mxu0 0.0
    %2027 = vmatprep.subr.mxu0 0.0
    %2028 = vmatpush1.msra.mxu0 0.0
    %2029 = vmatprep.subr.mxu0 0.0
    %2030 = vmatpush1.msra.mxu0 0.0
    %2031 = vmatprep.subr.mxu0 0.0
    %2032 = vmatpush1.msra.mxu0 0.0
    %2033 = vmatprep.subr.mxu0 0.0
    %2034 = vmatpush1.msra.mxu0 0.0
    %2035 = vmatprep.subr.mxu0 0.0
    %2036 = vmatpush1.msra.mxu0 0.0
    %2037 = vmatprep.subr.mxu0 0.0
    %2038 = vmatpush1.msra.mxu0 0.0
    %2039 = vmatprep.subr.mxu0 0.0
    %2040 = vmatpush1.msra.mxu0 0.0
    %2041 = vmatprep.subr.mxu0 0.0
    %2042 = vmatpush1.msra.mxu0 0.0
    %2043 = vmatprep.subr.mxu0 0.0
    %2044 = vmatpush1.msra.mxu0 0.0
    %2045 = vmatprep.subr.mxu0 0.0
    %2046 = vmatpush1.msra.mxu0 0.0
    %2047 = vmatprep.subr.mxu0 0.0
    %2048 = vmatpush1.msra.mxu0 0.0
    %2049 = vmatprep.subr.mxu0 0.0
    %2050 = vmatpush1.msra.mxu0 0.0
    %2051 = vmatprep.subr.mxu0 0.0
    %2052 = vmatpush1.msra.mxu0 0.0
    %2053 = vmatprep.subr.mxu0 0.0
    %2054 = vmatpush1.msra.mxu0 0.0
    %2055 = vmatprep.subr.mxu0 0.0
    %2056 = vmatpush1.msra.mxu0 0.0
    %2057 = vmatprep.subr.mxu0 0.0
    %2058 = vmatpush1.msra.mxu0 0.0
    %2059 = vmatprep.subr.mxu0 0.0
    %2060 = vmatpush1.msra.mxu0 0.0
    %2061 = vmatprep.subr.mxu0 0.0
    %2062 = vmatpush1.msra.mxu0 0.0
    %2063 = vmatprep.subr.mxu0 0.0
    %2064 = vmatpush1.msra.mxu0 0.0
    %2065 = vmatprep.subr.mxu0 0.0
    %2066 = vmatpush1.msra.mxu0 0.0
    %2067 = vmatprep.mubr.f32.mxu0 0.0
    %2068 = vmatmul.mubr.f32.gmra.mrb[0].mxu0 %v2001
    %v2069 = vpop.f32.mrb[0].mxu0
    %v2070 = vadd.f32 %v1995, %v2069
    %v2071 = vpop.f32.mrb[0].mxu0
    %2072 = vdwg.mxu0
    %v2073 = vtanh.pop %v2070
    %s2074 = scalar_lea.vmem %s8, 40
    %v2075 = vld [vmem:[%s2074] sm:$0xff]
    %v2076 = vld [vmem:[%s2074 + $0x8] sm:$0xff]
    %v2077 = vld [vmem:[%s2074 + $0x10] sm:$0xff]
    %v2078 = vld [vmem:[%s2074 + $0x18] sm:$0xff]
    %v2079 = vld [vmem:[%s2074 + $0x20] sm:$0xff]
    %v2080 = vlaneseq
    %v2081 = vshrl.u32 %v2080, 7
    %v2082 = vsub.s32 0, %v2081
    %v2083 = vrot.slane %v2079, %v2082
    %v2085 = vsel %vm167, %v2073, 0
    %2087 = vmatprep.subr.mxu0 0.0
    %2088 = vmatpush1.msra.mxu0 %v2075
    %2089 = vmatprep.subr.mxu0 0.0
    %2090 = vmatpush1.msra.mxu0 %v2076
    %2091 = vmatprep.subr.mxu0 0.0
    %2092 = vmatpush1.msra.mxu0 %v2077
    %2093 = vmatprep.subr.mxu0 0.0
    %2094 = vmatpush1.msra.mxu0 %v2078
    %2095 = vmatprep.subr.mxu0 0.0
    %2096 = vmatpush1.msra.mxu0 0.0
    %2097 = vmatprep.subr.mxu0 0.0
    %2098 = vmatpush1.msra.mxu0 0.0
    %2099 = vmatprep.subr.mxu0 0.0
    %2100 = vmatpush1.msra.mxu0 0.0
    %2101 = vmatprep.subr.mxu0 0.0
    %2102 = vmatpush1.msra.mxu0 0.0
    %2103 = vmatprep.subr.mxu0 0.0
    %2104 = vmatpush1.msra.mxu0 0.0
    %2105 = vmatprep.subr.mxu0 0.0
    %2106 = vmatpush1.msra.mxu0 0.0
    %2107 = vmatprep.subr.mxu0 0.0
    %2108 = vmatpush1.msra.mxu0 0.0
    %2109 = vmatprep.subr.mxu0 0.0
    %2110 = vmatpush1.msra.mxu0 0.0
    %2111 = vmatprep.subr.mxu0 0.0
    %2112 = vmatpush1.msra.mxu0 0.0
    %2113 = vmatprep.subr.mxu0 0.0
    %2114 = vmatpush1.msra.mxu0 0.0
    %2115 = vmatprep.subr.mxu0 0.0
    %2116 = vmatpush1.msra.mxu0 0.0
    %2117 = vmatprep.subr.mxu0 0.0
    %2118 = vmatpush1.msra.mxu0 0.0
    %2119 = vmatprep.subr.mxu0 0.0
    %2120 = vmatpush1.msra.mxu0 0.0
    %2121 = vmatprep.subr.mxu0 0.0
    %2122 = vmatpush1.msra.mxu0 0.0
    %2123 = vmatprep.subr.mxu0 0.0
    %2124 = vmatpush1.msra.mxu0 0.0
    %2125 = vmatprep.subr.mxu0 0.0
    %2126 = vmatpush1.msra.mxu0 0.0
    %2127 = vmatprep.subr.mxu0 0.0
    %2128 = vmatpush1.msra.mxu0 0.0
    %2129 = vmatprep.subr.mxu0 0.0
    %2130 = vmatpush1.msra.mxu0 0.0
    %2131 = vmatprep.subr.mxu0 0.0
    %2132 = vmatpush1.msra.mxu0 0.0
    %2133 = vmatprep.subr.mxu0 0.0
    %2134 = vmatpush1.msra.mxu0 0.0
    %2135 = vmatprep.subr.mxu0 0.0
    %2136 = vmatpush1.msra.mxu0 0.0
    %2137 = vmatprep.subr.mxu0 0.0
    %2138 = vmatpush1.msra.mxu0 0.0
    %2139 = vmatprep.subr.mxu0 0.0
    %2140 = vmatpush1.msra.mxu0 0.0
    %2141 = vmatprep.subr.mxu0 0.0
    %2142 = vmatpush1.msra.mxu0 0.0
    %2143 = vmatprep.subr.mxu0 0.0
    %2144 = vmatpush1.msra.mxu0 0.0
    %2145 = vmatprep.subr.mxu0 0.0
    %2146 = vmatpush1.msra.mxu0 0.0
    %2147 = vmatprep.subr.mxu0 0.0
    %2148 = vmatpush1.msra.mxu0 0.0
    %2149 = vmatprep.subr.mxu0 0.0
    %2150 = vmatpush1.msra.mxu0 0.0
    %2151 = vmatprep.mubr.f32.mxu0 0.0
    %2152 = vmatmul.mubr.f32.gmra.mrb[0].mxu0 %v2085
    %v2153 = vpop.f32.mrb[0].mxu0
    %v2154 = vadd.f32 %v2083, %v2153
    %v2155 = vpop.f32.mrb[0].mxu0
    %2156 = vdwg.mxu0
    %2157 = vst [vmem:[#allocation5] sm:$0x3] %v2154
    // Predicated region
    $region42: #{spam_classifier_forward.1} parent=1 // pred_check
      _
    $region43: #{spam_classifier_forward.1} parent=1 // pred_check_branch
      %2159 = sbr.rel (0) target = $region45
    $region44: #{spam_classifier_forward.1} parent=1 // pred_region
      %s2161 = ssub.s32 32, 32
      %2162 = vsyncadd [#allocation4], %s2161
      %s2164 = sshll.u32 [#allocation5], 4
      %s2165 = int_to_ptr.vmem [resolvable:$true] %s2164
      %2167 = dma.vmem_to_hbm [thread:$0]  %s2165, 32, %s9, [#allocation4]
    $region45: #{spam_classifier_forward.1} parent=1 // pred_fallthru
      _
    // Predicated region
    $region46: #{spam_classifier_forward.1} parent=1 // pred_check
      _
    $region47: #{spam_classifier_forward.1} parent=1 // pred_check_branch
      %2169 = sbr.rel (0) target = $region49
    $region48: #{spam_classifier_forward.1} parent=1 // pred_region
      %2170 = dma.done [#allocation4], 32
    $region49: #{spam_classifier_forward.1} parent=1 // pred_fallthru
      _
    %2171 = vsyncpa [#allocation3], 1
    %2172 = vsyncpa [#allocation4], 1

</llo_original>
